<compile_context>
chip_gen: v7x
topology: tpu7x:2x2x1
jax: 0.10.0
libtpu: 0.0.40
codegen_flags: <defaults>
</compile_context>

<pallas_src>
import jax
import jax.numpy as jnp
from jax.experimental import pallas as pl
from jax.experimental.pallas import tpu as pltpu


def visual_attention_kernel(
    img_ref,     # (TB, N, F) bf16  image features for TB batch elements
    hid_ref,     # (TB, D)    f32   decoder hidden states
    w_emb_ref,   # (F, D)     bf16  att_embed Linear weight
    b_emb_ref,   # (1, D)     f32
    w_fa_ref,    # (D, A)     bf16  features_att weight
    b_fa_ref,    # (1, A)     f32
    w_da_ref,    # (D, A)     bf16  decoder_att weight
    b_da_ref,    # (1, A)     f32
    w_full_ref,  # (1, A)     f32   full_att weight as a row (applied on the VPU)
    out_ref,     # (TB, F)    f32   context output (lane-dense slab)
):
    TB, N, F = img_ref.shape
    A = w_fa_ref.shape[1]

    x = img_ref[...]                              # (TB, N, F) bf16
    x2 = x.reshape(TB * N, F)                     # fold batch into the matmul M dimension

    # att_embed: Linear(F -> D) + ReLU   (Dropout(0.5) == identity in eval mode)
    fe = jnp.dot(x2, w_emb_ref[...], preferred_element_type=jnp.float32) + b_emb_ref[...]
    fe = jnp.maximum(fe, 0.0)                     # (TB*N, D) f32

    # features_att: Linear(D -> A) over all TB*N rows at once
    att1 = jnp.dot(fe.astype(jnp.bfloat16), w_fa_ref[...],
                   preferred_element_type=jnp.float32) + b_fa_ref[...]    # (TB*N, A)
    att1 = att1.reshape(TB, N, A)

    # decoder_att: one (TB, D) @ (D, A) matmul for the whole batch tile
    att2 = jnp.dot(hid_ref[...].astype(jnp.bfloat16), w_da_ref[...],
                   preferred_element_type=jnp.float32) + b_da_ref[...]    # (TB, A)

    e = jnp.maximum(att1 + att2[:, None, :], 0.0)                         # (TB, N, A) f32

    # full_att: Linear(A -> 1) as a VPU multiply + lane reduction.  The scalar bias is
    # a uniform shift of every logit in a row, so it cancels in the softmax and is
    # dropped entirely (saves one input DMA and a broadcast-add).
    wf = w_full_ref[...][None, :, :]                                      # (1, 1, A) f32
    logits = jnp.sum(e * wf, axis=-1)                                     # (TB, N) f32

    # softmax over the N regions (torch dim=1), in f32, on a squeezed (TB, N) layout
    m = jnp.max(logits, axis=1, keepdims=True)                            # (TB, 1)
    p = jnp.exp(logits - m)                                               # (TB, N)
    denom = jnp.sum(p, axis=1, keepdims=True)                             # (TB, 1)
    alpha = p * pl.reciprocal(denom, approx=True)                         # (TB, N)

    # Weighted sum of the *raw* bf16 image features; implicit promotion to f32 lets
    # Mosaic fuse the convert into the multiply (no explicit f32 copy of the tile).
    context = jnp.sum(alpha[:, :, None] * x, axis=1)                      # (TB, F) f32
    out_ref[...] = context.astype(out_ref.dtype)


def _vmem_capacity_bytes():
    """Best-effort per-core VMEM capacity query; conservative (v7x) fallback."""
    try:
        info = pltpu.get_tpu_info()
        for name in ("vmem_capacity_bytes", "vmem_size_bytes", "vmem_bytes"):
            v = getattr(info, name, None)
            if v:
                return int(v)
    except Exception:
        pass
    return 64 * 1024 * 1024   # v7x per-TensorCore VMEM; safe lower bound for all gens


def _step_vmem_bytes(tb, N, F, D, A):
    """Conservative per-grid-step VMEM byte estimate for the batch tile `tb`."""
    bf16, f32 = 2, 4
    # Double-buffered streamed blocks (BlockSpec pipeline).
    streamed = 2 * (tb * N * F * bf16      # image features (bf16)
                    + tb * F * f32         # output slab (f32)
                    + tb * D * f32)        # decoder hidden (f32)
    # Resident weights/biases; constant index maps still get pipeline buffers -> 2x.
    weights = 2 * ((F * D + 2 * D * A) * bf16 + (D + 3 * A) * f32)
    # f32 intermediates materialized in the body.
    interm = (tb * N * D * f32             # fe
              + 2 * tb * N * A * f32       # att1 and e
              + tb * N * F * f32)          # alpha * x product pass before the reduce
    return streamed + weights + interm


def _pick_tile_batch(B, N, F, D, A, budget_bytes, min_steps=4, mxu_m=256):
    """Largest batch tile that (a) divides B, (b) is a multiple of 8 so the (TB, D)/(TB, F)
    blocks satisfy the (8, 128) rule, (c) fits the per-step VMEM byte budget, while
    preferring >= `min_steps` grid steps (>= 2 per core under v7x megacore) and an
    MXU-width-aligned M = TB*N on the 256-wide v6e/v7x MXUs."""
    cands = [tb for tb in range(8, B + 1, 8) if B % tb == 0]
    if not cands:
        # Tiny / awkward batch: fall back to one full-array block (legal, single step,
        # non-pipelined -- acceptable for B < 8 or batches with no multiple-of-8 divisor).
        return B
    feas = [tb for tb in cands if _step_vmem_bytes(tb, N, F, D, A) <= budget_bytes]
    if not feas:
        feas = [min(cands)]   # smallest tile; may spill but stays runnable

    def score(tb):
        steps = B // tb
        return (steps >= min_steps,        # DMA/compute overlap on every step, both v7x TCs busy
                (tb * N) % mxu_m == 0,     # fill the 2x256 MXU on v6e/v7x (128 is the v5e floor)
                tb)                        # then: fattest step
    return max(feas, key=score)


def visual_attention_c(image_features, decoder_hidden, params, tb=None):
    B, N, F = image_features.shape
    D = params["w_emb"].shape[1]
    A = params["w_fa"].shape[1]

    # Per-generation VMEM policy: ~48 MiB scoped limit on v7x (64 MiB/TC), ~96 MiB on
    # v5e/v6e (128 MiB).  The tile picker budgets against 90% of that limit.
    vmem_cap = _vmem_capacity_bytes()
    vmem_limit = min(96 * 1024 * 1024, (3 * vmem_cap) // 4)
    if tb is None:
        tb = _pick_tile_batch(B, N, F, D, A, budget_bytes=(vmem_limit * 9) // 10)
    assert B % tb == 0, "batch must be divisible by the batch tile"
    grid = (B // tb,)

    bf16, f32 = jnp.bfloat16, jnp.float32
    img_bf = image_features.astype(bf16)            # halves HBM traffic of the big tensor
    hid_f32 = decoder_hidden.astype(f32)
    w_emb = params["w_emb"].astype(bf16)
    w_fa = params["w_fa"].astype(bf16)
    w_da = params["w_da"].astype(bf16)
    b_emb = params["b_emb"].astype(f32).reshape(1, D)
    b_fa = params["b_fa"].astype(f32).reshape(1, A)
    b_da = params["b_da"].astype(f32).reshape(1, A)
    w_full = params["w_full"].astype(f32).reshape(1, A)   # (A, 1) -> (1, A) row
    # full_att bias intentionally not passed: it cancels in the softmax.

    const = lambda shape: pl.BlockSpec(shape, lambda b: tuple(0 for _ in shape))

    out = pl.pallas_call(
        visual_attention_kernel,
        out_shape=jax.ShapeDtypeStruct((B, F), f32),
        grid=grid,
        in_specs=[
            pl.BlockSpec((tb, N, F), lambda b: (b, 0, 0)),   # image features, per batch tile
            pl.BlockSpec((tb, D), lambda b: (b, 0)),         # decoder hidden, per batch tile
            const((F, D)), const((1, D)),                    # att_embed
            const((D, A)), const((1, A)),                    # features_att
            const((D, A)), const((1, A)),                    # decoder_att
            const((1, A)),                                   # full_att weight row
        ],
        out_specs=pl.BlockSpec((tb, F), lambda b: (b, 0)),   # lane-dense (TB, F) slab
        compiler_params=pltpu.CompilerParams(
            dimension_semantics=("parallel",),
            vmem_limit_bytes=vmem_limit,
        ),
    )(img_bf, hid_f32, w_emb, b_emb, w_fa, b_fa, w_da, b_da, w_full)
    return out


def reference_f32(image_features, decoder_hidden, params):
    # Faithful float32 reference for the torch module (includes the full_att bias).
    fe = jnp.maximum(image_features @ params["w_emb"] + params["b_emb"], 0.0)
    att1 = fe @ params["w_fa"] + params["b_fa"]                       # (B, N, A)
    att2 = decoder_hidden @ params["w_da"] + params["b_da"]           # (B, A)
    e = jnp.maximum(att1 + att2[:, None, :], 0.0)
    att = (e @ params["w_full"] + params["b_full"])[..., 0]           # (B, N)
    alpha = jax.nn.softmax(att, axis=1)
    return (image_features * alpha[..., None]).sum(axis=1)            # (B, F)


def reference_mixed(image_features, decoder_hidden, params):
    # Mirrors the kernel's precision choices (bf16 matmul operands, f32 accumulation,
    # f32 softmax / weighted sum, full_att bias omitted since it cancels in softmax) so
    # the comparison isolates kernel bugs from expected bf16 rounding.
    bf16, f32 = jnp.bfloat16, jnp.float32
    B, N, F = image_features.shape
    A = params["w_fa"].shape[1]
    x = image_features.astype(bf16)
    h = decoder_hidden.astype(bf16)
    fe = jnp.dot(x.reshape(B * N, F), params["w_emb"].astype(bf16),
                 preferred_element_type=f32) + params["b_emb"]
    fe = jnp.maximum(fe, 0.0)
    att1 = jnp.dot(fe.astype(bf16), params["w_fa"].astype(bf16),
                   preferred_element_type=f32) + params["b_fa"]
    att1 = att1.reshape(B, N, A)
    att2 = jnp.dot(h, params["w_da"].astype(bf16),
                   preferred_element_type=f32) + params["b_da"]
    e = jnp.maximum(att1 + att2[:, None, :], 0.0)
    logits = jnp.sum(e * params["w_full"].reshape(1, 1, A), axis=-1)  # bias cancels in softmax
    m = jnp.max(logits, axis=1, keepdims=True)
    p = jnp.exp(logits - m)
    alpha = p / jnp.sum(p, axis=1, keepdims=True)
    return jnp.sum(alpha[..., None] * x.astype(f32), axis=1)


if __name__ == "__main__":
    # Small but TPU-friendly shapes: B batches, N image regions, image_features_dim F,
    # decoder_dim D, attention_dim A.  With B=32/N=16 the picker chooses TB=8 ->
    # grid=(4,) (>= 2 steps per TensorCore under v7x megacore), matmul M = TB*N = 128.
    B, N, F, D, A = 32, 16, 128, 128, 128

    key = jax.random.PRNGKey(0)
    keys = jax.random.split(key, 10)
    scale = 0.1
    params = {
        "w_emb":  scale * jax.random.normal(keys[0], (F, D), jnp.float32),
        "b_emb":  scale * jax.random.normal(keys[1], (1, D), jnp.float32),
        "w_fa":   scale * jax.random.normal(keys[2], (D, A), jnp.float32),
        "b_fa":   scale * jax.random.normal(keys[3], (1, A), jnp.float32),
        "w_da":   scale * jax.random.normal(keys[4], (D, A), jnp.float32),
        "b_da":   scale * jax.random.normal(keys[5], (1, A), jnp.float32),
        "w_full": scale * jax.random.normal(keys[6], (A, 1), jnp.float32),
        "b_full": scale * jax.random.normal(keys[7], (1, 1), jnp.float32),
    }
    image_features = jax.random.normal(keys[8], (B, N, F), jnp.float32)
    decoder_hidden = jax.random.normal(keys[9], (B, D), jnp.float32)

    ctx = visual_attention_c(image_features, decoder_hidden, params)
    ctx = jax.block_until_ready(ctx)
    assert ctx.shape == (B, F)

    # Tight check against the precision-matched reference (same bf16 casts, f32 math).
    ref_mixed = reference_mixed(image_features, decoder_hidden, params)
    assert jnp.allclose(ctx, ref_mixed, atol=1e-2, rtol=1e-2), \
        "mismatch vs precision-matched reference"

    # Sanity check against the pure-f32 reference (allowing expected bf16 drift).
    ref_f32 = reference_f32(image_features, decoder_hidden, params)
    assert float(jnp.max(jnp.abs(ctx - ref_f32))) < 0.1, \
        "mismatch vs float32 reference beyond expected bf16 drift"

    print("KERNEL_OK")
</pallas_src>

<mosaic_0001>
module attributes {stable_mosaic.version = 11 : i64} {
  func.func @visual_attention_kernel(%arg0: i32, %arg1: memref<8x16x128xbf16, #tpu.memory_space<vmem>>, %arg2: memref<8x128xf32, #tpu.memory_space<vmem>>, %arg3: memref<128x128xbf16, #tpu.memory_space<vmem>>, %arg4: memref<1x128xf32, #tpu.memory_space<vmem>>, %arg5: memref<128x128xbf16, #tpu.memory_space<vmem>>, %arg6: memref<1x128xf32, #tpu.memory_space<vmem>>, %arg7: memref<128x128xbf16, #tpu.memory_space<vmem>>, %arg8: memref<1x128xf32, #tpu.memory_space<vmem>>, %arg9: memref<1x128xf32, #tpu.memory_space<vmem>>, %arg10: memref<8x128xf32, #tpu.memory_space<vmem>>) attributes {dimension_semantics = [#tpu.dimension_semantics<parallel>], iteration_bounds = array<i64: 4>, scalar_prefetch = 0 : i64, scratch_operands = 0 : i64, tpu.core_type = #tpu.core_type<tc>, window_params = [{transform_indices = @transform_0, window_bounds = array<i64: 8, 16, 128>}, {transform_indices = @transform_1, window_bounds = array<i64: 8, 128>}, {pipeline_mode = #tpu.pipeline_mode<synchronous>, transform_indices = @transform_2, window_bounds = array<i64: 128, 128>}, {pipeline_mode = #tpu.pipeline_mode<synchronous>, transform_indices = @transform_3, window_bounds = array<i64: 1, 128>}, {pipeline_mode = #tpu.pipeline_mode<synchronous>, transform_indices = @transform_4, window_bounds = array<i64: 128, 128>}, {pipeline_mode = #tpu.pipeline_mode<synchronous>, transform_indices = @transform_5, window_bounds = array<i64: 1, 128>}, {pipeline_mode = #tpu.pipeline_mode<synchronous>, transform_indices = @transform_6, window_bounds = array<i64: 128, 128>}, {pipeline_mode = #tpu.pipeline_mode<synchronous>, transform_indices = @transform_7, window_bounds = array<i64: 1, 128>}, {pipeline_mode = #tpu.pipeline_mode<synchronous>, transform_indices = @transform_8, window_bounds = array<i64: 1, 128>}, {transform_indices = @transform_9, window_bounds = array<i64: 8, 128>}]} {
    %c0 = arith.constant 0 : index
    %c0_0 = arith.constant 0 : index
    %c0_1 = arith.constant 0 : index
    %0 = vector.load %arg1[%c0, %c0_0, %c0_1] : memref<8x16x128xbf16, #tpu.memory_space<vmem>>, vector<8x16x128xbf16>
    %1 = vector.shape_cast %0 : vector<8x16x128xbf16> to vector<128x128xbf16>
    %c0_2 = arith.constant 0 : index
    %c0_3 = arith.constant 0 : index
    %2 = vector.load %arg3[%c0_2, %c0_3] : memref<128x128xbf16, #tpu.memory_space<vmem>>, vector<128x128xbf16>
    %cst = arith.constant dense<0.000000e+00> : vector<128x128xf32>
    %3 = tpu.matmul %1, %2, %cst {dimension_numbers = #tpu.dot_dimension_numbers<[1], [0], [0], [1], [0, 0, 1, 1], [], []>} : vector<128x128xbf16>, vector<128x128xbf16>, vector<128x128xf32> -> vector<128x128xf32>
    %c0_4 = arith.constant 0 : index
    %c0_5 = arith.constant 0 : index
    %4 = vector.load %arg4[%c0_4, %c0_5] : memref<1x128xf32, #tpu.memory_space<vmem>>, vector<1x128xf32>
    %5 = vector.broadcast %4 : vector<1x128xf32> to vector<128x128xf32>
    %6 = arith.addf %3, %5 : vector<128x128xf32>
    %cst_6 = arith.constant 0.000000e+00 : f32
    %7 = vector.broadcast %cst_6 : f32 to vector<128x128xf32>
    %8 = arith.maximumf %6, %7 : vector<128x128xf32>
    %9 = arith.truncf %8 : vector<128x128xf32> to vector<128x128xbf16>
    %c0_7 = arith.constant 0 : index
    %c0_8 = arith.constant 0 : index
    %10 = vector.load %arg5[%c0_7, %c0_8] : memref<128x128xbf16, #tpu.memory_space<vmem>>, vector<128x128xbf16>
    %cst_9 = arith.constant dense<0.000000e+00> : vector<128x128xf32>
    %11 = tpu.matmul %9, %10, %cst_9 {dimension_numbers = #tpu.dot_dimension_numbers<[1], [0], [0], [1], [0, 0, 1, 1], [], []>} : vector<128x128xbf16>, vector<128x128xbf16>, vector<128x128xf32> -> vector<128x128xf32>
    %c0_10 = arith.constant 0 : index
    %c0_11 = arith.constant 0 : index
    %12 = vector.load %arg6[%c0_10, %c0_11] : memref<1x128xf32, #tpu.memory_space<vmem>>, vector<1x128xf32>
    %13 = vector.broadcast %12 : vector<1x128xf32> to vector<128x128xf32>
    %14 = arith.addf %11, %13 : vector<128x128xf32>
    %15 = vector.shape_cast %14 : vector<128x128xf32> to vector<8x16x128xf32>
    %c0_12 = arith.constant 0 : index
    %c0_13 = arith.constant 0 : index
    %16 = vector.load %arg2[%c0_12, %c0_13] : memref<8x128xf32, #tpu.memory_space<vmem>>, vector<8x128xf32>
    %17 = arith.truncf %16 : vector<8x128xf32> to vector<8x128xbf16>
    %c0_14 = arith.constant 0 : index
    %c0_15 = arith.constant 0 : index
    %18 = vector.load %arg7[%c0_14, %c0_15] : memref<128x128xbf16, #tpu.memory_space<vmem>>, vector<128x128xbf16>
    %cst_16 = arith.constant dense<0.000000e+00> : vector<8x128xf32>
    %19 = tpu.matmul %17, %18, %cst_16 {dimension_numbers = #tpu.dot_dimension_numbers<[1], [0], [0], [1], [0, 0, 1, 1], [], []>} : vector<8x128xbf16>, vector<128x128xbf16>, vector<8x128xf32> -> vector<8x128xf32>
    %c0_17 = arith.constant 0 : index
    %c0_18 = arith.constant 0 : index
    %20 = vector.load %arg8[%c0_17, %c0_18] : memref<1x128xf32, #tpu.memory_space<vmem>>, vector<1x128xf32>
    %21 = vector.broadcast %20 : vector<1x128xf32> to vector<8x128xf32>
    %22 = arith.addf %19, %21 : vector<8x128xf32>
    %23 = vector.shape_cast %22 : vector<8x128xf32> to vector<8x1x128xf32>
    %24 = vector.broadcast %23 : vector<8x1x128xf32> to vector<8x16x128xf32>
    %25 = arith.addf %15, %24 : vector<8x16x128xf32>
    %cst_19 = arith.constant 0.000000e+00 : f32
    %26 = vector.broadcast %cst_19 : f32 to vector<8x16x128xf32>
    %27 = arith.maximumf %25, %26 : vector<8x16x128xf32>
    %c0_20 = arith.constant 0 : index
    %c0_21 = arith.constant 0 : index
    %28 = vector.load %arg9[%c0_20, %c0_21] : memref<1x128xf32, #tpu.memory_space<vmem>>, vector<1x128xf32>
    %29 = vector.shape_cast %28 : vector<1x128xf32> to vector<1x1x128xf32>
    %30 = vector.broadcast %29 : vector<1x1x128xf32> to vector<8x16x128xf32>
    %31 = arith.mulf %27, %30 : vector<8x16x128xf32>
    %cst_22 = arith.constant dense<0.000000e+00> : vector<8x16xf32>
    %32 = vector.multi_reduction <add>, %31, %cst_22 [2] : vector<8x16x128xf32> to vector<8x16xf32>
    %cst_23 = arith.constant dense<0xFF800000> : vector<8xf32>
    %33 = vector.multi_reduction <maximumf>, %32, %cst_23 [1] : vector<8x16xf32> to vector<8xf32>
    %34 = vector.shape_cast %33 : vector<8xf32> to vector<8x1xf32>
    %35 = vector.broadcast %34 : vector<8x1xf32> to vector<8x16xf32>
    %36 = arith.subf %32, %35 : vector<8x16xf32>
    %37 = math.exp %36 : vector<8x16xf32>
    %cst_24 = arith.constant dense<0.000000e+00> : vector<8xf32>
    %38 = vector.multi_reduction <add>, %37, %cst_24 [1] : vector<8x16xf32> to vector<8xf32>
    %39 = vector.shape_cast %38 : vector<8xf32> to vector<8x1xf32>
    %40 = tpu.reciprocal %39 {approx = true} : vector<8x1xf32> -> vector<8x1xf32>
    %41 = vector.broadcast %40 : vector<8x1xf32> to vector<8x16xf32>
    %42 = arith.mulf %37, %41 : vector<8x16xf32>
    %43 = vector.shape_cast %42 : vector<8x16xf32> to vector<8x16x1xf32>
    %44 = arith.extf %0 : vector<8x16x128xbf16> to vector<8x16x128xf32>
    %45 = vector.broadcast %43 : vector<8x16x1xf32> to vector<8x16x128xf32>
    %46 = arith.mulf %45, %44 : vector<8x16x128xf32>
    %cst_25 = arith.constant dense<0.000000e+00> : vector<8x128xf32>
    %47 = vector.multi_reduction <add>, %46, %cst_25 [1] : vector<8x16x128xf32> to vector<8x128xf32>
    %c0_26 = arith.constant 0 : index
    %c0_27 = arith.constant 0 : index
    %48 = vector.load %arg10[%c0_26, %c0_27] : memref<8x128xf32, #tpu.memory_space<vmem>>, vector<8x128xf32>
    tpu.vector_store %arg10[%c0_26, %c0_27], %47 {strides = array<i32>} : memref<8x128xf32, #tpu.memory_space<vmem>>, vector<8x128xf32>,
    return
  }
  func.func @transform_0(%arg0: i32) -> (i32, i32, i32) {
    %c0_i32 = arith.constant 0 : i32
    %c0_i32_0 = arith.constant 0 : i32
    %c0_i32_1 = arith.constant 0 : i32
    return %arg0, %c0_i32, %c0_i32_0 : i32, i32, i32
  }
  func.func @transform_1(%arg0: i32) -> (i32, i32) {
    %c0_i32 = arith.constant 0 : i32
    %c0_i32_0 = arith.constant 0 : i32
    return %arg0, %c0_i32 : i32, i32
  }
  func.func @transform_2(%arg0: i32) -> (i32, i32) {
    %c0_i32 = arith.constant 0 : i32
    %c0_i32_0 = arith.constant 0 : i32
    %c0_i32_1 = arith.constant 0 : i32
    return %c0_i32, %c0_i32_0 : i32, i32
  }
  func.func @transform_3(%arg0: i32) -> (i32, i32) {
    %c0_i32 = arith.constant 0 : i32
    %c0_i32_0 = arith.constant 0 : i32
    %c0_i32_1 = arith.constant 0 : i32
    return %c0_i32, %c0_i32_0 : i32, i32
  }
  func.func @transform_4(%arg0: i32) -> (i32, i32) {
    %c0_i32 = arith.constant 0 : i32
    %c0_i32_0 = arith.constant 0 : i32
    %c0_i32_1 = arith.constant 0 : i32
    return %c0_i32, %c0_i32_0 : i32, i32
  }
  func.func @transform_5(%arg0: i32) -> (i32, i32) {
    %c0_i32 = arith.constant 0 : i32
    %c0_i32_0 = arith.constant 0 : i32
    %c0_i32_1 = arith.constant 0 : i32
    return %c0_i32, %c0_i32_0 : i32, i32
  }
  func.func @transform_6(%arg0: i32) -> (i32, i32) {
    %c0_i32 = arith.constant 0 : i32
    %c0_i32_0 = arith.constant 0 : i32
    %c0_i32_1 = arith.constant 0 : i32
    return %c0_i32, %c0_i32_0 : i32, i32
  }
  func.func @transform_7(%arg0: i32) -> (i32, i32) {
    %c0_i32 = arith.constant 0 : i32
    %c0_i32_0 = arith.constant 0 : i32
    %c0_i32_1 = arith.constant 0 : i32
    return %c0_i32, %c0_i32_0 : i32, i32
  }
  func.func @transform_8(%arg0: i32) -> (i32, i32) {
    %c0_i32 = arith.constant 0 : i32
    %c0_i32_0 = arith.constant 0 : i32
    %c0_i32_1 = arith.constant 0 : i32
    return %c0_i32, %c0_i32_0 : i32, i32
  }
  func.func @transform_9(%arg0: i32) -> (i32, i32) {
    %c0_i32 = arith.constant 0 : i32
    %c0_i32_0 = arith.constant 0 : i32
    return %arg0, %c0_i32 : i32, i32
  }
}

</mosaic_0001>

<llo_original>
// kernel: tpu_custom_call.1
$region0: #{tpu_custom_call.1}
  #allocation0 [shape = 'u32[]', space=smem, size = 0x4, offset = 0x4, fixed_abs, tag = 'smem constant byte address 0x4 - core index']
  #allocation1 [shape = 'u32[144,128]{1,0:T(1,128)}', space=vmem, size = 0x12000, scoped, tag = 'internal scratch']
  %s0 = inlined_call_operand.hbm [shape: bf16[32,16,128], index: 0, kind: input, shape index: {}]
  %s1 = inlined_call_operand.hbm [shape: f32[32,128], index: 1, kind: input, shape index: {}]
  %s2 = inlined_call_operand.hbm [shape: bf16[128,128], index: 2, kind: input, shape index: {}]
  %s3 = inlined_call_operand.vmem [shape: f32[1,128], index: 3, kind: input, shape index: {}]
  %s4 = inlined_call_operand.hbm [shape: bf16[128,128], index: 4, kind: input, shape index: {}]
  %s5 = inlined_call_operand.vmem [shape: f32[1,128], index: 5, kind: input, shape index: {}]
  %s6 = inlined_call_operand.hbm [shape: bf16[128,128], index: 6, kind: input, shape index: {}]
  %s7 = inlined_call_operand.vmem [shape: f32[1,128], index: 7, kind: input, shape index: {}]
  %s8 = inlined_call_operand.vmem [shape: f32[1,128], index: 8, kind: input, shape index: {}]
  %s9 = inlined_call_operand.hbm [shape: f32[32,128], index: 9, kind: output, shape index: {}]
  %s10 = sld [smem:[#allocation0]]
  $region89: #{tpu_custom_call.1} parent=0
    _
  %s12 = ssub.s32 1, %s10
  %s13 = scalar_select 0, %s12, %s10
  $region1: #{tpu_custom_call.1} parent=0
    #allocation2 [shape = 'u8[65536]{0}', space=vmem, size = 0x10000, scoped, tag = 'input window, operand 0']
    #allocation3 [shape = 's32[2]{0}', space=sflag, size = 0x8, scoped, tag = 'scoped memory for tpu_custom_call.1']
    #allocation4 [shape = 's32[2]{0}', space=sflag, size = 0x8, scoped, tag = 'scoped memory for tpu_custom_call.1']
    #allocation5 [shape = 'u8[8192]{0}', space=vmem, size = 0x2000, scoped, tag = 'input window, operand 1']
    #allocation6 [shape = 's32[2]{0}', space=sflag, size = 0x8, scoped, tag = 'scoped memory for tpu_custom_call.1']
    #allocation7 [shape = 'u8[32768]{0}', space=vmem, size = 0x8000, scoped, tag = 'input window, operand 2, single buffered']
    #allocation8 [shape = 'u8[32768]{0}', space=vmem, size = 0x8000, scoped, tag = 'input window, operand 4, single buffered']
    #allocation9 [shape = 's32[1]{0}', space=sflag, size = 0x4, scoped, tag = 'scoped memory for tpu_custom_call.1']
    #allocation10 [shape = 'u8[32768]{0}', space=vmem, size = 0x8000, scoped, tag = 'input window, operand 6, single buffered']
    #allocation11 [shape = 'u8[8192]{0}', space=vmem, size = 0x2000, scoped, tag = 'output window, operand 0']
    %14 = vsyncpa [#allocation3], 0
    %s15 = scalar_lea.sflag [#allocation3], 1
    %16 = vsyncpa %s15, 0
    %17 = vsyncpa [#allocation6], 0
    %s18 = scalar_lea.sflag [#allocation6], 1
    %19 = vsyncpa %s18, 0
    %20 = vsyncpa [#allocation9], 0
    %21 = vsyncpa [#allocation4], 0
    %s22 = scalar_lea.sflag [#allocation4], 1
    %23 = vsyncpa %s22, 0
    loop: start=0, step=1, limit=6
    $region2: #{tpu_custom_call.1} parent=1 // loop_pre_header
      _
    $region3: #{tpu_custom_call.1} parent=1 // loop_header
      %s25 = sphi 0, %s29
      %p26 = scmp.ge.s32.totalorder %s25, 6
      %s35 = sphi 0, %s37
      %s38 = sphi 0, %s35
      %s39 = sphi 0, %s38
      %s55 = sphi 0, %s39
      %s61 = sphi 0, %s63
      %s64 = sphi 0, %s61
      %s65 = sphi 0, %s64
      %s81 = sphi 0, %s65
      %s85 = sphi 0, %s85
      %s87 = sphi 0, %s85
      %s88 = sphi 0, %s87
      %s102 = sphi 0, %s88
      %s106 = sphi 0, %s106
      %s108 = sphi 0, %s106
      %s109 = sphi 0, %s108
      %s123 = sphi 0, %s109
      %s127 = sphi 0, %s127
      %s129 = sphi 0, %s127
      %s130 = sphi 0, %s129
      %s144 = sphi 0, %s130
      %s148 = sphi 0, %s148
      %s150 = sphi 0, %s148
      %s151 = sphi 0, %s150
      %s165 = sphi 0, %s151
      %s169 = sphi 0, %s169
      %s171 = sphi 0, %s169
      %s172 = sphi 0, %s171
      %s186 = sphi 0, %s172
      %s190 = sphi 0, %s190
      %s192 = sphi 0, %s190
      %s193 = sphi 0, %s192
      %s207 = sphi 0, %s193
      %s211 = sphi 0, %s211
      %s213 = sphi 0, %s211
      %s214 = sphi 0, %s213
      %s228 = sphi 0, %s214
      %s234 = sphi 0, %s236
      %s237 = sphi 0, %s234
      %s238 = sphi 0, %s237
      %s254 = sphi 0, %s238
    $region4: #{tpu_custom_call.1} parent=1 // loop_header_branch
      %28 = sbr.rel (%p26) target = $region8
    $region5: #{tpu_custom_call.1} parent=1 // loop_body
      %s30 = ssub.s32 %s25, 1
      %s31 = ssub.s32 %s25, 2
      %s32 = sadd.s32 %s25, 1
      %s33 = ssub.s32 %s25, %s32
      %p34 = scmp.eq.s32.totalorder %s33, 0
      %s36 = sadd.s32 %s35, 1
      %s37 = scalar_select %p34, %s35, %s36
      %p40 = pneg %p34
      %p41 = scmp.eq.s32.totalorder %s25, 3
      %p42 = por %p40, %p41
      %p43 = scmp.ne.s32.totalorder %s35, %s38
      %p44 = scmp.eq.s32.totalorder %s25, 0
      %p45 = por %p43, %p44
      %p46 = scmp.ne.s32.totalorder %s35, %s38
      %p47 = scmp.eq.s32.totalorder %s30, 3
      %p48 = por %p46, %p47
      %p49 = scmp.ne.s32.totalorder %s38, %s39
      %p50 = scmp.eq.s32.totalorder %s30, 0
      %p51 = por %p49, %p50
      %p52 = scmp.ne.s32.totalorder %s38, %s39
      %p53 = scmp.eq.s32.totalorder %s31, 3
      %p54 = por %p52, %p53
      %p56 = scmp.ne.s32.totalorder %s39, %s55
      %p57 = scmp.eq.s32.totalorder %s31, 0
      %p58 = por %p56, %p57
      %s59 = ssub.s32 %s25, %s32
      %p60 = scmp.eq.s32.totalorder %s59, 0
      %s62 = sadd.s32 %s61, 1
      %s63 = scalar_select %p60, %s61, %s62
      %p66 = pneg %p60
      %p67 = scmp.eq.s32.totalorder %s25, 3
      %p68 = por %p66, %p67
      %p69 = scmp.ne.s32.totalorder %s61, %s64
      %p70 = scmp.eq.s32.totalorder %s25, 0
      %p71 = por %p69, %p70
      %p72 = scmp.ne.s32.totalorder %s61, %s64
      %p73 = scmp.eq.s32.totalorder %s30, 3
      %p74 = por %p72, %p73
      %p75 = scmp.ne.s32.totalorder %s64, %s65
      %p76 = scmp.eq.s32.totalorder %s30, 0
      %p77 = por %p75, %p76
      %p78 = scmp.ne.s32.totalorder %s64, %s65
      %p79 = scmp.eq.s32.totalorder %s31, 3
      %p80 = por %p78, %p79
      %p82 = scmp.ne.s32.totalorder %s65, %s81
      %p83 = scmp.eq.s32.totalorder %s31, 0
      %p84 = por %p82, %p83
      %s86 = sadd.s32 %s85, 1
      %p89 = scmp.eq.s32.totalorder %s25, 3
      %p90 = scmp.ne.s32.totalorder %s85, %s87
      %p91 = scmp.eq.s32.totalorder %s25, 0
      %p92 = por %p90, %p91
      %p93 = scmp.ne.s32.totalorder %s85, %s87
      %p94 = scmp.eq.s32.totalorder %s30, 3
      %p95 = por %p93, %p94
      %p96 = scmp.ne.s32.totalorder %s87, %s88
      %p97 = scmp.eq.s32.totalorder %s30, 0
      %p98 = por %p96, %p97
      %p99 = scmp.ne.s32.totalorder %s87, %s88
      %p100 = scmp.eq.s32.totalorder %s31, 3
      %p101 = por %p99, %p100
      %p103 = scmp.ne.s32.totalorder %s88, %s102
      %p104 = scmp.eq.s32.totalorder %s31, 0
      %p105 = por %p103, %p104
      %s107 = sadd.s32 %s106, 1
      %p110 = scmp.eq.s32.totalorder %s25, 3
      %p111 = scmp.ne.s32.totalorder %s106, %s108
      %p112 = scmp.eq.s32.totalorder %s25, 0
      %p113 = por %p111, %p112
      %p114 = scmp.ne.s32.totalorder %s106, %s108
      %p115 = scmp.eq.s32.totalorder %s30, 3
      %p116 = por %p114, %p115
      %p117 = scmp.ne.s32.totalorder %s108, %s109
      %p118 = scmp.eq.s32.totalorder %s30, 0
      %p119 = por %p117, %p118
      %p120 = scmp.ne.s32.totalorder %s108, %s109
      %p121 = scmp.eq.s32.totalorder %s31, 3
      %p122 = por %p120, %p121
      %p124 = scmp.ne.s32.totalorder %s109, %s123
      %p125 = scmp.eq.s32.totalorder %s31, 0
      %p126 = por %p124, %p125
      %s128 = sadd.s32 %s127, 1
      %p131 = scmp.eq.s32.totalorder %s25, 3
      %p132 = scmp.ne.s32.totalorder %s127, %s129
      %p133 = scmp.eq.s32.totalorder %s25, 0
      %p134 = por %p132, %p133
      %p135 = scmp.ne.s32.totalorder %s127, %s129
      %p136 = scmp.eq.s32.totalorder %s30, 3
      %p137 = por %p135, %p136
      %p138 = scmp.ne.s32.totalorder %s129, %s130
      %p139 = scmp.eq.s32.totalorder %s30, 0
      %p140 = por %p138, %p139
      %p141 = scmp.ne.s32.totalorder %s129, %s130
      %p142 = scmp.eq.s32.totalorder %s31, 3
      %p143 = por %p141, %p142
      %p145 = scmp.ne.s32.totalorder %s130, %s144
      %p146 = scmp.eq.s32.totalorder %s31, 0
      %p147 = por %p145, %p146
      %s149 = sadd.s32 %s148, 1
      %p152 = scmp.eq.s32.totalorder %s25, 3
      %p153 = scmp.ne.s32.totalorder %s148, %s150
      %p154 = scmp.eq.s32.totalorder %s25, 0
      %p155 = por %p153, %p154
      %p156 = scmp.ne.s32.totalorder %s148, %s150
      %p157 = scmp.eq.s32.totalorder %s30, 3
      %p158 = por %p156, %p157
      %p159 = scmp.ne.s32.totalorder %s150, %s151
      %p160 = scmp.eq.s32.totalorder %s30, 0
      %p161 = por %p159, %p160
      %p162 = scmp.ne.s32.totalorder %s150, %s151
      %p163 = scmp.eq.s32.totalorder %s31, 3
      %p164 = por %p162, %p163
      %p166 = scmp.ne.s32.totalorder %s151, %s165
      %p167 = scmp.eq.s32.totalorder %s31, 0
      %p168 = por %p166, %p167
      %s170 = sadd.s32 %s169, 1
      %p173 = scmp.eq.s32.totalorder %s25, 3
      %p174 = scmp.ne.s32.totalorder %s169, %s171
      %p175 = scmp.eq.s32.totalorder %s25, 0
      %p176 = por %p174, %p175
      %p177 = scmp.ne.s32.totalorder %s169, %s171
      %p178 = scmp.eq.s32.totalorder %s30, 3
      %p179 = por %p177, %p178
      %p180 = scmp.ne.s32.totalorder %s171, %s172
      %p181 = scmp.eq.s32.totalorder %s30, 0
      %p182 = por %p180, %p181
      %p183 = scmp.ne.s32.totalorder %s171, %s172
      %p184 = scmp.eq.s32.totalorder %s31, 3
      %p185 = por %p183, %p184
      %p187 = scmp.ne.s32.totalorder %s172, %s186
      %p188 = scmp.eq.s32.totalorder %s31, 0
      %p189 = por %p187, %p188
      %s191 = sadd.s32 %s190, 1
      %p194 = scmp.eq.s32.totalorder %s25, 3
      %p195 = scmp.ne.s32.totalorder %s190, %s192
      %p196 = scmp.eq.s32.totalorder %s25, 0
      %p197 = por %p195, %p196
      %p198 = scmp.ne.s32.totalorder %s190, %s192
      %p199 = scmp.eq.s32.totalorder %s30, 3
      %p200 = por %p198, %p199
      %p201 = scmp.ne.s32.totalorder %s192, %s193
      %p202 = scmp.eq.s32.totalorder %s30, 0
      %p203 = por %p201, %p202
      %p204 = scmp.ne.s32.totalorder %s192, %s193
      %p205 = scmp.eq.s32.totalorder %s31, 3
      %p206 = por %p204, %p205
      %p208 = scmp.ne.s32.totalorder %s193, %s207
      %p209 = scmp.eq.s32.totalorder %s31, 0
      %p210 = por %p208, %p209
      %s212 = sadd.s32 %s211, 1
      %p215 = scmp.eq.s32.totalorder %s25, 3
      %p216 = scmp.ne.s32.totalorder %s211, %s213
      %p217 = scmp.eq.s32.totalorder %s25, 0
      %p218 = por %p216, %p217
      %p219 = scmp.ne.s32.totalorder %s211, %s213
      %p220 = scmp.eq.s32.totalorder %s30, 3
      %p221 = por %p219, %p220
      %p222 = scmp.ne.s32.totalorder %s213, %s214
      %p223 = scmp.eq.s32.totalorder %s30, 0
      %p224 = por %p222, %p223
      %p225 = scmp.ne.s32.totalorder %s213, %s214
      %p226 = scmp.eq.s32.totalorder %s31, 3
      %p227 = por %p225, %p226
      %p229 = scmp.ne.s32.totalorder %s214, %s228
      %p230 = scmp.eq.s32.totalorder %s31, 0
      %p231 = por %p229, %p230
      %s232 = ssub.s32 %s25, %s32
      %p233 = scmp.eq.s32.totalorder %s232, 0
      %s235 = sadd.s32 %s234, 1
      %s236 = scalar_select %p233, %s234, %s235
      %p239 = pneg %p233
      %p240 = scmp.eq.s32.totalorder %s25, 3
      %p241 = por %p239, %p240
      %p242 = scmp.ne.s32.totalorder %s234, %s237
      %p243 = scmp.eq.s32.totalorder %s25, 0
      %p244 = por %p242, %p243
      %p245 = scmp.ne.s32.totalorder %s234, %s237
      %p246 = scmp.eq.s32.totalorder %s30, 3
      %p247 = por %p245, %p246
      %p248 = scmp.ne.s32.totalorder %s237, %s238
      %p249 = scmp.eq.s32.totalorder %s30, 0
      %p250 = por %p248, %p249
      %p251 = scmp.ne.s32.totalorder %s237, %s238
      %p252 = scmp.eq.s32.totalorder %s31, 3
      %p253 = por %p251, %p252
      %p255 = scmp.ne.s32.totalorder %s238, %s254
      %p256 = scmp.eq.s32.totalorder %s31, 0
      %p257 = por %p255, %p256
      %p258 = scmp.le.s32.totalorder 1, %s25
      %p259 = scmp.lt.s32.totalorder %s25, 5
      %p260 = pnand %p258, %p259
      %p261 = pneg %p260
      // Predicated region
      $region9: #{tpu_custom_call.1} parent=5 // pred_check
        _
      $region10: #{tpu_custom_call.1} parent=5 // pred_check_branch
        %263 = sbr.rel (%p260) target = $region12
      $region11: #{tpu_custom_call.1} parent=5 // pred_region
        %s264 = ssub.s32 %s25, 1
        // Predicated region
        $region13: #{tpu_custom_call.1} parent=11 // pred_check
          %p265 = pneg %p98
        $region14: #{tpu_custom_call.1} parent=11 // pred_check_branch
          %267 = sbr.rel (%p265) target = $region16
        $region15: #{tpu_custom_call.1} parent=11 // pred_region
          %s269 = ssub.s32 1024, 1024
          %270 = vsyncadd [#allocation6], %s269
          %s271 = sshll.u32 [#allocation7], 4
          %s272 = int_to_ptr.vmem [resolvable:$true] %s271
          %277 = dma.hbm_to_vmem [thread:$0]  %s2, 1024, %s272, [#allocation6], 64, 64, 4
        $region16: #{tpu_custom_call.1} parent=11 // pred_fallthru
          _
        // Predicated region
        $region17: #{tpu_custom_call.1} parent=11 // pred_check
          %p278 = pneg %p119
        $region18: #{tpu_custom_call.1} parent=11 // pred_check_branch
          %280 = sbr.rel (%p278) target = $region20
        $region19: #{tpu_custom_call.1} parent=11 // pred_region
          _
        $region20: #{tpu_custom_call.1} parent=11 // pred_fallthru
          _
        // Predicated region
        $region21: #{tpu_custom_call.1} parent=11 // pred_check
          %p281 = pneg %p140
        $region22: #{tpu_custom_call.1} parent=11 // pred_check_branch
          %283 = sbr.rel (%p281) target = $region24
        $region23: #{tpu_custom_call.1} parent=11 // pred_region
          %s285 = ssub.s32 1024, 1024
          %286 = vsyncadd [#allocation9], %s285
          %s287 = sshll.u32 [#allocation8], 4
          %s288 = int_to_ptr.vmem [resolvable:$true] %s287
          %293 = dma.hbm_to_vmem [thread:$0]  %s4, 1024, %s288, [#allocation9], 64, 64, 4
        $region24: #{tpu_custom_call.1} parent=11 // pred_fallthru
          _
        // Predicated region
        $region25: #{tpu_custom_call.1} parent=11 // pred_check
          %p294 = pneg %p161
        $region26: #{tpu_custom_call.1} parent=11 // pred_check_branch
          %296 = sbr.rel (%p294) target = $region28
        $region27: #{tpu_custom_call.1} parent=11 // pred_region
          _
        $region28: #{tpu_custom_call.1} parent=11 // pred_fallthru
          _
        // Predicated region
        $region29: #{tpu_custom_call.1} parent=11 // pred_check
          %p297 = pneg %p182
        $region30: #{tpu_custom_call.1} parent=11 // pred_check_branch
          %299 = sbr.rel (%p297) target = $region32
        $region31: #{tpu_custom_call.1} parent=11 // pred_region
          %s301 = ssub.s32 1024, 1024
          %302 = vsyncadd [#allocation9], %s301
          %s303 = sshll.u32 [#allocation10], 4
          %s304 = int_to_ptr.vmem [resolvable:$true] %s303
          %309 = dma.hbm_to_vmem [thread:$0]  %s6, 1024, %s304, [#allocation9], 64, 64, 4
        $region32: #{tpu_custom_call.1} parent=11 // pred_fallthru
          _
        // Predicated region
        $region33: #{tpu_custom_call.1} parent=11 // pred_check
          %p310 = pneg %p203
        $region34: #{tpu_custom_call.1} parent=11 // pred_check_branch
          %312 = sbr.rel (%p310) target = $region36
        $region35: #{tpu_custom_call.1} parent=11 // pred_region
          _
        $region36: #{tpu_custom_call.1} parent=11 // pred_fallthru
          _
        // Predicated region
        $region37: #{tpu_custom_call.1} parent=11 // pred_check
          %p313 = pneg %p224
        $region38: #{tpu_custom_call.1} parent=11 // pred_check_branch
          %315 = sbr.rel (%p313) target = $region40
        $region39: #{tpu_custom_call.1} parent=11 // pred_region
          _
        $region40: #{tpu_custom_call.1} parent=11 // pred_fallthru
          _
      $region12: #{tpu_custom_call.1} parent=5 // pred_fallthru
        _
      %p316 = scmp.lt.s32.totalorder %s25, 4
      // Predicated region
      $region41: #{tpu_custom_call.1} parent=5 // pred_check
        %p317 = pneg %p316
      $region42: #{tpu_custom_call.1} parent=5 // pred_check_branch
        %319 = sbr.rel (%p317) target = $region44
      $region43: #{tpu_custom_call.1} parent=5 // pred_region
        // Predicated region
        $region45: #{tpu_custom_call.1} parent=43 // pred_check
          %p320 = pneg %p45
        $region46: #{tpu_custom_call.1} parent=43 // pred_check_branch
          %322 = sbr.rel (%p320) target = $region48
        $region47: #{tpu_custom_call.1} parent=43 // pred_region
          %s323 = sand.u32 %s35, 1
          %s324 = scalar_lea.sflag [#allocation3], %s323
          %s325 = sand.u32 %s35, 1
          %s326 = smul.addr %s325, 64
          %s327 = scalar_lea.vmem [#allocation2], %s326
          %s328 = smul.u32 8, %s25
          %s330 = ssub.s32 1024, 1024
          %331 = vsyncadd %s324, %s330
          %s332 = smul.addr %s328, 2
          %s333 = smul.addr %s332, 64
          %s334 = scalar_lea.hbm %s0, %s333
          %s335 = sshll.u32 %s327, 4
          %s336 = int_to_ptr.vmem [resolvable:$true] %s335
          %341 = dma.hbm_to_vmem [thread:$0]  %s334, 1024, %s336, %s324, 64, 64, 4
        $region48: #{tpu_custom_call.1} parent=43 // pred_fallthru
          _
        // Predicated region
        $region49: #{tpu_custom_call.1} parent=43 // pred_check
          %p342 = pneg %p71
        $region50: #{tpu_custom_call.1} parent=43 // pred_check_branch
          %344 = sbr.rel (%p342) target = $region52
        $region51: #{tpu_custom_call.1} parent=43 // pred_region
          %s345 = sand.u32 %s25, 1
          %s346 = scalar_lea.sflag [#allocation6], %s345
          %s347 = sand.u32 %s61, 1
          %s348 = smul.addr %s347, 8
          %s349 = scalar_lea.vmem [#allocation5], %s348
          %s351 = ssub.s32 128, 128
          %352 = vsyncadd %s346, %s351
          %s353 = smul.addr %s25, 128
          %s354 = scalar_lea.hbm %s1, %s353
          %s356 = sshll.u32 %s349, 4
          %s357 = int_to_ptr.vmem [resolvable:$true] %s356
          %359 = dma.hbm_to_vmem [thread:$0]  %s354, 128, %s357, %s346
        $region52: #{tpu_custom_call.1} parent=43 // pred_fallthru
          _
      $region44: #{tpu_custom_call.1} parent=5 // pred_fallthru
        _
      %p360 = scmp.le.s32.totalorder 1, %s25
      %p361 = scmp.lt.s32.totalorder %s25, 5
      %p362 = pnand %p360, %p361
      %p363 = pneg %p362
      // Predicated region
      $region53: #{tpu_custom_call.1} parent=5 // pred_check
        _
      $region54: #{tpu_custom_call.1} parent=5 // pred_check_branch
        %365 = sbr.rel (%p362) target = $region56
      $region55: #{tpu_custom_call.1} parent=5 // pred_region
        %s366 = ssub.s32 %s25, 1
        %s367 = sand.u32 %s38, 1
        %s368 = scalar_lea.sflag [#allocation3], %s367
        %s369 = sand.u32 %s38, 1
        %s370 = smul.addr %s369, 64
        %s371 = scalar_lea.vmem [#allocation2], %s370
        // Predicated region
        $region57: #{tpu_custom_call.1} parent=55 // pred_check
          %p372 = pneg %p51
        $region58: #{tpu_custom_call.1} parent=55 // pred_check_branch
          %374 = sbr.rel (%p372) target = $region60
        $region59: #{tpu_custom_call.1} parent=55 // pred_region
          %375 = dma.done %s368, 1024
        $region60: #{tpu_custom_call.1} parent=55 // pred_fallthru
          _
        %s376 = sand.u32 %s30, 1
        %s377 = scalar_lea.sflag [#allocation6], %s376
        %s378 = sand.u32 %s64, 1
        %s379 = smul.addr %s378, 8
        %s380 = scalar_lea.vmem [#allocation5], %s379
        // Predicated region
        $region61: #{tpu_custom_call.1} parent=55 // pred_check
          %p381 = pneg %p77
        $region62: #{tpu_custom_call.1} parent=55 // pred_check_branch
          %383 = sbr.rel (%p381) target = $region64
        $region63: #{tpu_custom_call.1} parent=55 // pred_region
          %384 = dma.done %s377, 128
        $region64: #{tpu_custom_call.1} parent=55 // pred_fallthru
          _
        // Predicated region
        $region65: #{tpu_custom_call.1} parent=55 // pred_check
          %p385 = pneg %p98
        $region66: #{tpu_custom_call.1} parent=55 // pred_check_branch
          %387 = sbr.rel (%p385) target = $region68
        $region67: #{tpu_custom_call.1} parent=55 // pred_region
          %388 = dma.done [#allocation6], 1024
        $region68: #{tpu_custom_call.1} parent=55 // pred_fallthru
          _
        // Predicated region
        $region69: #{tpu_custom_call.1} parent=55 // pred_check
          %p389 = pneg %p140
        $region70: #{tpu_custom_call.1} parent=55 // pred_check_branch
          %391 = sbr.rel (%p389) target = $region72
        $region71: #{tpu_custom_call.1} parent=55 // pred_region
          %392 = dma.done [#allocation9], 1024
        $region72: #{tpu_custom_call.1} parent=55 // pred_fallthru
          _
        // Predicated region
        $region73: #{tpu_custom_call.1} parent=55 // pred_check
          %p393 = pneg %p182
        $region74: #{tpu_custom_call.1} parent=55 // pred_check_branch
          %395 = sbr.rel (%p393) target = $region76
        $region75: #{tpu_custom_call.1} parent=55 // pred_region
          %396 = dma.done [#allocation9], 1024
        $region76: #{tpu_custom_call.1} parent=55 // pred_fallthru
          _
        %s397 = sand.u32 %s38, 1
        %s398 = scalar_lea.sflag [#allocation3], %s397
        %s399 = sand.u32 %s38, 1
        %s400 = smul.addr %s399, 64
        %s401 = scalar_lea.vmem [#allocation2], %s400
        %p402 = pneg %p51
        %p403 = pneg %p48
        %s404 = sand.u32 %s30, 1
        %s405 = scalar_lea.sflag [#allocation6], %s404
        %s406 = sand.u32 %s64, 1
        %s407 = smul.addr %s406, 8
        %s408 = scalar_lea.vmem [#allocation5], %s407
        %p409 = pneg %p77
        %p410 = pneg %p74
        %p411 = pneg %p98
        %p412 = pneg %p95
        %p413 = pneg %p119
        %p414 = pneg %p116
        %p415 = pneg %p140
        %p416 = pneg %p137
        %p417 = pneg %p161
        %p418 = pneg %p158
        %p419 = pneg %p182
        %p420 = pneg %p179
        %p421 = pneg %p203
        %p422 = pneg %p200
        %p423 = pneg %p224
        %p424 = pneg %p221
        %p425 = pneg %p250
        %p426 = pneg %p247
        %s427 = sand.u32 %s237, 1
        %s428 = scalar_lea.sflag [#allocation4], %s427
        %s429 = sand.u32 %s237, 1
        %s430 = smul.addr %s429, 8
        %s431 = scalar_lea.vmem [#allocation11], %s430
        %s432 = smul.u32 8, %s30
        %v434 = vld [vmem:[%s371] sm:$0xf]
        %v435 = vld [vmem:[%s371 + $0x4] sm:$0xf]
        %v436 = vld [vmem:[%s371 + $0x8] sm:$0xf]
        %v437 = vld [vmem:[%s371 + $0xc] sm:$0xf]
        %v438 = vld [vmem:[%s371 + $0x10] sm:$0xf]
        %v439 = vld [vmem:[%s371 + $0x14] sm:$0xf]
        %v440 = vld [vmem:[%s371 + $0x18] sm:$0xf]
        %v441 = vld [vmem:[%s371 + $0x1c] sm:$0xf]
        %v442 = vld [vmem:[%s371 + $0x20] sm:$0xf]
        %v443 = vld [vmem:[%s371 + $0x24] sm:$0xf]
        %v444 = vld [vmem:[%s371 + $0x28] sm:$0xf]
        %v445 = vld [vmem:[%s371 + $0x2c] sm:$0xf]
        %v446 = vld [vmem:[%s371 + $0x30] sm:$0xf]
        %v447 = vld [vmem:[%s371 + $0x34] sm:$0xf]
        %v448 = vld [vmem:[%s371 + $0x38] sm:$0xf]
        %v449 = vld [vmem:[%s371 + $0x3c] sm:$0xf]
        %v450 = vld [vmem:[#allocation7] sm:$0xf]
        %v451 = vld [vmem:[#allocation7 + $0x4] sm:$0xf]
        %v452 = vld [vmem:[#allocation7 + $0x8] sm:$0xf]
        %v453 = vld [vmem:[#allocation7 + $0xc] sm:$0xf]
        %v454 = vld [vmem:[#allocation7 + $0x10] sm:$0xf]
        %v455 = vld [vmem:[#allocation7 + $0x14] sm:$0xf]
        %v456 = vld [vmem:[#allocation7 + $0x18] sm:$0xf]
        %v457 = vld [vmem:[#allocation7 + $0x1c] sm:$0xf]
        %v458 = vld [vmem:[#allocation7 + $0x20] sm:$0xf]
        %v459 = vld [vmem:[#allocation7 + $0x24] sm:$0xf]
        %v460 = vld [vmem:[#allocation7 + $0x28] sm:$0xf]
        %v461 = vld [vmem:[#allocation7 + $0x2c] sm:$0xf]
        %v462 = vld [vmem:[#allocation7 + $0x30] sm:$0xf]
        %v463 = vld [vmem:[#allocation7 + $0x34] sm:$0xf]
        %v464 = vld [vmem:[#allocation7 + $0x38] sm:$0xf]
        %v465 = vld [vmem:[#allocation7 + $0x3c] sm:$0xf]
        %v466 = vld [vmem:[%s3] sm:$0x1]
        %v468 = vlaneseq
        %v469 = vshrl.u32 %v468, 7
        %v470 = vsub.s32 0, %v469
        %v471 = vrot.slane %v466, %v470
        %v489 = vunpack.c.l.b16 %v434
        %v490 = vunpack.c.l.b16 %v435
        %v491 = vunpack.c.l.b16 %v436
        %v492 = vunpack.c.l.b16 %v437
        %v493 = vunpack.c.l.b16 %v438
        %v494 = vunpack.c.l.b16 %v439
        %v495 = vunpack.c.l.b16 %v440
        %v496 = vunpack.c.l.b16 %v441
        %v497 = vunpack.c.l.b16 %v442
        %v498 = vunpack.c.l.b16 %v443
        %v499 = vunpack.c.l.b16 %v444
        %v500 = vunpack.c.l.b16 %v445
        %v501 = vunpack.c.l.b16 %v446
        %v502 = vunpack.c.l.b16 %v447
        %v503 = vunpack.c.l.b16 %v448
        %v504 = vunpack.c.l.b16 %v449
        %v505 = vpack.c.b16 %v490, %v489
        %v506 = vpack.c.b16 %v492, %v491
        %v507 = vpack.c.b16 %v494, %v493
        %v508 = vpack.c.b16 %v496, %v495
        %v509 = vpack.c.b16 %v498, %v497
        %v510 = vpack.c.b16 %v500, %v499
        %v511 = vpack.c.b16 %v502, %v501
        %v512 = vpack.c.b16 %v504, %v503
        %v537 = vunpack.c.l.b16 %v450
        %v538 = vunpack.c.l.b16 %v451
        %v539 = vunpack.c.l.b16 %v452
        %v540 = vunpack.c.l.b16 %v453
        %v541 = vunpack.c.l.b16 %v454
        %v542 = vunpack.c.l.b16 %v455
        %v543 = vunpack.c.l.b16 %v456
        %v544 = vunpack.c.l.b16 %v457
        %v545 = vunpack.c.l.b16 %v458
        %v546 = vunpack.c.l.b16 %v459
        %v547 = vunpack.c.l.b16 %v460
        %v548 = vunpack.c.l.b16 %v461
        %v549 = vunpack.c.l.b16 %v462
        %v550 = vunpack.c.l.b16 %v463
        %v551 = vunpack.c.l.b16 %v464
        %v552 = vunpack.c.l.b16 %v465
        %v553 = vpack.c.b16 %v538, %v537
        %v554 = vpack.c.b16 %v540, %v539
        %v555 = vpack.c.b16 %v542, %v541
        %v556 = vpack.c.b16 %v544, %v543
        %v557 = vpack.c.b16 %v546, %v545
        %v558 = vpack.c.b16 %v548, %v547
        %v559 = vpack.c.b16 %v550, %v549
        %v560 = vpack.c.b16 %v552, %v551
        %569 = vmatprep.subr.bf16.mxu0 0
        %570 = vmatpush1.bf16.msra.mxu0 %v553
        %571 = vmatprep.subr.bf16.mxu0 0
        %572 = vmatpush1.bf16.msra.mxu0 %v554
        %573 = vmatprep.subr.bf16.mxu0 0
        %574 = vmatpush1.bf16.msra.mxu0 %v555
        %575 = vmatprep.subr.bf16.mxu0 0
        %576 = vmatpush1.bf16.msra.mxu0 %v556
        %577 = vmatprep.subr.bf16.mxu0 0
        %578 = vmatpush1.bf16.msra.mxu0 %v557
        %579 = vmatprep.subr.bf16.mxu0 0
        %580 = vmatpush1.bf16.msra.mxu0 %v558
        %581 = vmatprep.subr.bf16.mxu0 0
        %582 = vmatpush1.bf16.msra.mxu0 %v559
        %583 = vmatprep.subr.bf16.mxu0 0
        %584 = vmatpush1.bf16.msra.mxu0 %v560
        %585 = vmatprep.subr.bf16.mxu0 0
        %586 = vmatpush1.bf16.msra.mxu0 0
        %587 = vmatprep.subr.bf16.mxu0 0
        %588 = vmatpush1.bf16.msra.mxu0 0
        %589 = vmatprep.subr.bf16.mxu0 0
        %590 = vmatpush1.bf16.msra.mxu0 0
        %591 = vmatprep.subr.bf16.mxu0 0
        %592 = vmatpush1.bf16.msra.mxu0 0
        %593 = vmatprep.subr.bf16.mxu0 0
        %594 = vmatpush1.bf16.msra.mxu0 0
        %595 = vmatprep.subr.bf16.mxu0 0
        %596 = vmatpush1.bf16.msra.mxu0 0
        %597 = vmatprep.subr.bf16.mxu0 0
        %598 = vmatpush1.bf16.msra.mxu0 0
        %599 = vmatprep.subr.bf16.mxu0 0
        %600 = vmatpush1.bf16.msra.mxu0 0
        %601 = vmatprep.mubr.bf16.mxu0 0
        %602 = vmatmul.mubr.bf16.gmra.mrb[0].mxu0 %v505
        %v603 = vpop.f32.mrb[0].mxu0
        %v604 = vadd.f32 %v471, %v603
        %v605 = vpop.f32.mrb[0].mxu0
        %v606 = vpop.f32.mrb[0].mxu0
        %v607 = vadd.f32 %v471, %v606
        %v608 = vpop.f32.mrb[0].mxu0
        %609 = vmatprep.mubr.bf16.mxu0 0
        %610 = vmatmul.mubr.bf16.gmra.mrb[0].mxu0 %v506
        %v611 = vpop.f32.mrb[0].mxu0
        %v612 = vadd.f32 %v471, %v611
        %v613 = vpop.f32.mrb[0].mxu0
        %v614 = vpop.f32.mrb[0].mxu0
        %v615 = vadd.f32 %v471, %v614
        %v616 = vpop.f32.mrb[0].mxu0
        %617 = vmatprep.mubr.bf16.mxu0 0
        %618 = vmatmul.mubr.bf16.gmra.mrb[0].mxu0 %v507
        %v619 = vpop.f32.mrb[0].mxu0
        %v620 = vadd.f32 %v471, %v619
        %v621 = vpop.f32.mrb[0].mxu0
        %v622 = vpop.f32.mrb[0].mxu0
        %v623 = vadd.f32 %v471, %v622
        %v624 = vpop.f32.mrb[0].mxu0
        %625 = vmatprep.mubr.bf16.mxu0 0
        %626 = vmatmul.mubr.bf16.gmra.mrb[0].mxu0 %v508
        %v627 = vpop.f32.mrb[0].mxu0
        %v628 = vadd.f32 %v471, %v627
        %v629 = vpop.f32.mrb[0].mxu0
        %v630 = vpop.f32.mrb[0].mxu0
        %v631 = vadd.f32 %v471, %v630
        %v632 = vpop.f32.mrb[0].mxu0
        %633 = vmatprep.mubr.bf16.mxu0 0
        %634 = vmatmul.mubr.bf16.gmra.mrb[0].mxu0 %v509
        %v635 = vpop.f32.mrb[0].mxu0
        %v636 = vadd.f32 %v471, %v635
        %v637 = vpop.f32.mrb[0].mxu0
        %v638 = vpop.f32.mrb[0].mxu0
        %v639 = vadd.f32 %v471, %v638
        %v640 = vpop.f32.mrb[0].mxu0
        %641 = vmatprep.mubr.bf16.mxu0 0
        %642 = vmatmul.mubr.bf16.gmra.mrb[0].mxu0 %v510
        %v643 = vpop.f32.mrb[0].mxu0
        %v644 = vadd.f32 %v471, %v643
        %v645 = vpop.f32.mrb[0].mxu0
        %v646 = vpop.f32.mrb[0].mxu0
        %v647 = vadd.f32 %v471, %v646
        %v648 = vpop.f32.mrb[0].mxu0
        %649 = vmatprep.mubr.bf16.mxu0 0
        %650 = vmatmul.mubr.bf16.gmra.mrb[0].mxu0 %v511
        %v651 = vpop.f32.mrb[0].mxu0
        %v652 = vadd.f32 %v471, %v651
        %v653 = vpop.f32.mrb[0].mxu0
        %v654 = vpop.f32.mrb[0].mxu0
        %v655 = vadd.f32 %v471, %v654
        %v656 = vpop.f32.mrb[0].mxu0
        %657 = vmatprep.mubr.bf16.mxu0 0
        %658 = vmatmul.mubr.bf16.gmra.mrb[0].mxu0 %v512
        %v659 = vpop.f32.mrb[0].mxu0
        %v660 = vadd.f32 %v471, %v659
        %v661 = vpop.f32.mrb[0].mxu0
        %v662 = vpop.f32.mrb[0].mxu0
        %v663 = vadd.f32 %v471, %v662
        %v664 = vpop.f32.mrb[0].mxu0
        %665 = vdwg.mxu0
        %v666 = vmax.f32 %v604, 0.0
        %v667 = vmax.f32 %v607, 0.0
        %v668 = vmax.f32 %v612, 0.0
        %v669 = vmax.f32 %v615, 0.0
        %v670 = vmax.f32 %v620, 0.0
        %v671 = vmax.f32 %v623, 0.0
        %v672 = vmax.f32 %v628, 0.0
        %v673 = vmax.f32 %v631, 0.0
        %v674 = vmax.f32 %v636, 0.0
        %v675 = vmax.f32 %v639, 0.0
        %v676 = vmax.f32 %v644, 0.0
        %v677 = vmax.f32 %v647, 0.0
        %v678 = vmax.f32 %v652, 0.0
        %v679 = vmax.f32 %v655, 0.0
        %v680 = vmax.f32 %v660, 0.0
        %v681 = vmax.f32 %v663, 0.0
        %v682 = vpack.c.bf16 %v667, %v666
        %v683 = vpack.c.bf16 %v669, %v668
        %v684 = vpack.c.bf16 %v671, %v670
        %v685 = vpack.c.bf16 %v673, %v672
        %v686 = vpack.c.bf16 %v675, %v674
        %v687 = vpack.c.bf16 %v677, %v676
        %v688 = vpack.c.bf16 %v679, %v678
        %v689 = vpack.c.bf16 %v681, %v680
        %v690 = vld [vmem:[#allocation8] sm:$0xf]
        %v691 = vld [vmem:[#allocation8 + $0x4] sm:$0xf]
        %v692 = vld [vmem:[#allocation8 + $0x8] sm:$0xf]
        %v693 = vld [vmem:[#allocation8 + $0xc] sm:$0xf]
        %v694 = vld [vmem:[#allocation8 + $0x10] sm:$0xf]
        %v695 = vld [vmem:[#allocation8 + $0x14] sm:$0xf]
        %v696 = vld [vmem:[#allocation8 + $0x18] sm:$0xf]
        %v697 = vld [vmem:[#allocation8 + $0x1c] sm:$0xf]
        %v698 = vld [vmem:[#allocation8 + $0x20] sm:$0xf]
        %v699 = vld [vmem:[#allocation8 + $0x24] sm:$0xf]
        %v700 = vld [vmem:[#allocation8 + $0x28] sm:$0xf]
        %v701 = vld [vmem:[#allocation8 + $0x2c] sm:$0xf]
        %v702 = vld [vmem:[#allocation8 + $0x30] sm:$0xf]
        %v703 = vld [vmem:[#allocation8 + $0x34] sm:$0xf]
        %v704 = vld [vmem:[#allocation8 + $0x38] sm:$0xf]
        %v705 = vld [vmem:[#allocation8 + $0x3c] sm:$0xf]
        %v706 = vld [vmem:[%s5] sm:$0x1]
        %v708 = vlaneseq
        %v709 = vshrl.u32 %v708, 7
        %v710 = vsub.s32 0, %v709
        %v711 = vrot.slane %v706, %v710
        %v729 = vunpack.c.l.b16 %v690
        %v730 = vunpack.c.l.b16 %v691
        %v731 = vunpack.c.l.b16 %v692
        %v732 = vunpack.c.l.b16 %v693
        %v733 = vunpack.c.l.b16 %v694
        %v734 = vunpack.c.l.b16 %v695
        %v735 = vunpack.c.l.b16 %v696
        %v736 = vunpack.c.l.b16 %v697
        %v737 = vunpack.c.l.b16 %v698
        %v738 = vunpack.c.l.b16 %v699
        %v739 = vunpack.c.l.b16 %v700
        %v740 = vunpack.c.l.b16 %v701
        %v741 = vunpack.c.l.b16 %v702
        %v742 = vunpack.c.l.b16 %v703
        %v743 = vunpack.c.l.b16 %v704
        %v744 = vunpack.c.l.b16 %v705
        %v745 = vpack.c.b16 %v730, %v729
        %v746 = vpack.c.b16 %v732, %v731
        %v747 = vpack.c.b16 %v734, %v733
        %v748 = vpack.c.b16 %v736, %v735
        %v749 = vpack.c.b16 %v738, %v737
        %v750 = vpack.c.b16 %v740, %v739
        %v751 = vpack.c.b16 %v742, %v741
        %v752 = vpack.c.b16 %v744, %v743
        %761 = vmatprep.subr.bf16.mxu0 0
        %762 = vmatpush1.bf16.msra.mxu0 %v745
        %763 = vmatprep.subr.bf16.mxu0 0
        %764 = vmatpush1.bf16.msra.mxu0 %v746
        %765 = vmatprep.subr.bf16.mxu0 0
        %766 = vmatpush1.bf16.msra.mxu0 %v747
        %767 = vmatprep.subr.bf16.mxu0 0
        %768 = vmatpush1.bf16.msra.mxu0 %v748
        %769 = vmatprep.subr.bf16.mxu0 0
        %770 = vmatpush1.bf16.msra.mxu0 %v749
        %771 = vmatprep.subr.bf16.mxu0 0
        %772 = vmatpush1.bf16.msra.mxu0 %v750
        %773 = vmatprep.subr.bf16.mxu0 0
        %774 = vmatpush1.bf16.msra.mxu0 %v751
        %775 = vmatprep.subr.bf16.mxu0 0
        %776 = vmatpush1.bf16.msra.mxu0 %v752
        %777 = vmatprep.subr.bf16.mxu0 0
        %778 = vmatpush1.bf16.msra.mxu0 0
        %779 = vmatprep.subr.bf16.mxu0 0
        %780 = vmatpush1.bf16.msra.mxu0 0
        %781 = vmatprep.subr.bf16.mxu0 0
        %782 = vmatpush1.bf16.msra.mxu0 0
        %783 = vmatprep.subr.bf16.mxu0 0
        %784 = vmatpush1.bf16.msra.mxu0 0
        %785 = vmatprep.subr.bf16.mxu0 0
        %786 = vmatpush1.bf16.msra.mxu0 0
        %787 = vmatprep.subr.bf16.mxu0 0
        %788 = vmatpush1.bf16.msra.mxu0 0
        %789 = vmatprep.subr.bf16.mxu0 0
        %790 = vmatpush1.bf16.msra.mxu0 0
        %791 = vmatprep.subr.bf16.mxu0 0
        %792 = vmatpush1.bf16.msra.mxu0 0
        %793 = vmatprep.mubr.bf16.mxu0 0
        %794 = vmatmul.mubr.bf16.gmra.mrb[0].mxu0 %v682
        %v795 = vpop.f32.mrb[0].mxu0
        %v796 = vadd.f32 %v711, %v795
        %v797 = vpop.f32.mrb[0].mxu0
        %v798 = vpop.f32.mrb[0].mxu0
        %v799 = vadd.f32 %v711, %v798
        %v800 = vpop.f32.mrb[0].mxu0
        %801 = vmatprep.mubr.bf16.mxu0 0
        %802 = vmatmul.mubr.bf16.gmra.mrb[0].mxu0 %v683
        %v803 = vpop.f32.mrb[0].mxu0
        %v804 = vadd.f32 %v711, %v803
        %v805 = vpop.f32.mrb[0].mxu0
        %v806 = vpop.f32.mrb[0].mxu0
        %v807 = vadd.f32 %v711, %v806
        %v808 = vpop.f32.mrb[0].mxu0
        %809 = vmatprep.mubr.bf16.mxu0 0
        %810 = vmatmul.mubr.bf16.gmra.mrb[0].mxu0 %v684
        %v811 = vpop.f32.mrb[0].mxu0
        %v812 = vadd.f32 %v711, %v811
        %v813 = vpop.f32.mrb[0].mxu0
        %v814 = vpop.f32.mrb[0].mxu0
        %v815 = vadd.f32 %v711, %v814
        %v816 = vpop.f32.mrb[0].mxu0
        %817 = vmatprep.mubr.bf16.mxu0 0
        %818 = vmatmul.mubr.bf16.gmra.mrb[0].mxu0 %v685
        %v819 = vpop.f32.mrb[0].mxu0
        %v820 = vadd.f32 %v711, %v819
        %v821 = vpop.f32.mrb[0].mxu0
        %v822 = vpop.f32.mrb[0].mxu0
        %v823 = vadd.f32 %v711, %v822
        %v824 = vpop.f32.mrb[0].mxu0
        %825 = vmatprep.mubr.bf16.mxu0 0
        %826 = vmatmul.mubr.bf16.gmra.mrb[0].mxu0 %v686
        %v827 = vpop.f32.mrb[0].mxu0
        %v828 = vadd.f32 %v711, %v827
        %v829 = vpop.f32.mrb[0].mxu0
        %v830 = vpop.f32.mrb[0].mxu0
        %v831 = vadd.f32 %v711, %v830
        %v832 = vpop.f32.mrb[0].mxu0
        %833 = vmatprep.mubr.bf16.mxu0 0
        %834 = vmatmul.mubr.bf16.gmra.mrb[0].mxu0 %v687
        %v835 = vpop.f32.mrb[0].mxu0
        %v836 = vadd.f32 %v711, %v835
        %v837 = vpop.f32.mrb[0].mxu0
        %v838 = vpop.f32.mrb[0].mxu0
        %v839 = vadd.f32 %v711, %v838
        %v840 = vpop.f32.mrb[0].mxu0
        %841 = vmatprep.mubr.bf16.mxu0 0
        %842 = vmatmul.mubr.bf16.gmra.mrb[0].mxu0 %v688
        %v843 = vpop.f32.mrb[0].mxu0
        %v844 = vadd.f32 %v711, %v843
        %v845 = vpop.f32.mrb[0].mxu0
        %v846 = vpop.f32.mrb[0].mxu0
        %v847 = vadd.f32 %v711, %v846
        %v848 = vpop.f32.mrb[0].mxu0
        %849 = vmatprep.mubr.bf16.mxu0 0
        %850 = vmatmul.mubr.bf16.gmra.mrb[0].mxu0 %v689
        %v851 = vpop.f32.mrb[0].mxu0
        %v852 = vadd.f32 %v711, %v851
        %v853 = vpop.f32.mrb[0].mxu0
        %v854 = vpop.f32.mrb[0].mxu0
        %v855 = vadd.f32 %v711, %v854
        %v856 = vpop.f32.mrb[0].mxu0
        %857 = vdwg.mxu0
        %v858 = vld [vmem:[%s380] sm:$0xff]
        %v859 = vpack.c.bf16 %v858, %v858
        %v860 = vld [vmem:[#allocation10] sm:$0xf]
        %v861 = vld [vmem:[#allocation10 + $0x4] sm:$0xf]
        %v862 = vld [vmem:[#allocation10 + $0x8] sm:$0xf]
        %v863 = vld [vmem:[#allocation10 + $0xc] sm:$0xf]
        %v864 = vld [vmem:[#allocation10 + $0x10] sm:$0xf]
        %v865 = vld [vmem:[#allocation10 + $0x14] sm:$0xf]
        %v866 = vld [vmem:[#allocation10 + $0x18] sm:$0xf]
        %v867 = vld [vmem:[#allocation10 + $0x1c] sm:$0xf]
        %v868 = vld [vmem:[#allocation10 + $0x20] sm:$0xf]
        %v869 = vld [vmem:[#allocation10 + $0x24] sm:$0xf]
        %v870 = vld [vmem:[#allocation10 + $0x28] sm:$0xf]
        %v871 = vld [vmem:[#allocation10 + $0x2c] sm:$0xf]
        %v872 = vld [vmem:[#allocation10 + $0x30] sm:$0xf]
        %v873 = vld [vmem:[#allocation10 + $0x34] sm:$0xf]
        %v874 = vld [vmem:[#allocation10 + $0x38] sm:$0xf]
        %v875 = vld [vmem:[#allocation10 + $0x3c] sm:$0xf]
        %v876 = vld [vmem:[%s7] sm:$0x1]
        %v878 = vlaneseq
        %v879 = vshrl.u32 %v878, 7
        %v880 = vsub.s32 0, %v879
        %v881 = vrot.slane %v876, %v880
        %v899 = vunpack.c.l.b16 %v860
        %v900 = vunpack.c.l.b16 %v861
        %v901 = vunpack.c.l.b16 %v862
        %v902 = vunpack.c.l.b16 %v863
        %v903 = vunpack.c.l.b16 %v864
        %v904 = vunpack.c.l.b16 %v865
        %v905 = vunpack.c.l.b16 %v866
        %v906 = vunpack.c.l.b16 %v867
        %v907 = vunpack.c.l.b16 %v868
        %v908 = vunpack.c.l.b16 %v869
        %v909 = vunpack.c.l.b16 %v870
        %v910 = vunpack.c.l.b16 %v871
        %v911 = vunpack.c.l.b16 %v872
        %v912 = vunpack.c.l.b16 %v873
        %v913 = vunpack.c.l.b16 %v874
        %v914 = vunpack.c.l.b16 %v875
        %v915 = vpack.c.b16 %v900, %v899
        %v916 = vpack.c.b16 %v902, %v901
        %v917 = vpack.c.b16 %v904, %v903
        %v918 = vpack.c.b16 %v906, %v905
        %v919 = vpack.c.b16 %v908, %v907
        %v920 = vpack.c.b16 %v910, %v909
        %v921 = vpack.c.b16 %v912, %v911
        %v922 = vpack.c.b16 %v914, %v913
        %931 = vmatprep.subr.bf16.mxu0 0
        %932 = vmatpush1.bf16.msra.mxu0 %v915
        %933 = vmatprep.subr.bf16.mxu0 0
        %934 = vmatpush1.bf16.msra.mxu0 %v916
        %935 = vmatprep.subr.bf16.mxu0 0
        %936 = vmatpush1.bf16.msra.mxu0 %v917
        %937 = vmatprep.subr.bf16.mxu0 0
        %938 = vmatpush1.bf16.msra.mxu0 %v918
        %939 = vmatprep.subr.bf16.mxu0 0
        %940 = vmatpush1.bf16.msra.mxu0 %v919
        %941 = vmatprep.subr.bf16.mxu0 0
        %942 = vmatpush1.bf16.msra.mxu0 %v920
        %943 = vmatprep.subr.bf16.mxu0 0
        %944 = vmatpush1.bf16.msra.mxu0 %v921
        %945 = vmatprep.subr.bf16.mxu0 0
        %946 = vmatpush1.bf16.msra.mxu0 %v922
        %947 = vmatprep.subr.bf16.mxu0 0
        %948 = vmatpush1.bf16.msra.mxu0 0
        %949 = vmatprep.subr.bf16.mxu0 0
        %950 = vmatpush1.bf16.msra.mxu0 0
        %951 = vmatprep.subr.bf16.mxu0 0
        %952 = vmatpush1.bf16.msra.mxu0 0
        %953 = vmatprep.subr.bf16.mxu0 0
        %954 = vmatpush1.bf16.msra.mxu0 0
        %955 = vmatprep.subr.bf16.mxu0 0
        %956 = vmatpush1.bf16.msra.mxu0 0
        %957 = vmatprep.subr.bf16.mxu0 0
        %958 = vmatpush1.bf16.msra.mxu0 0
        %959 = vmatprep.subr.bf16.mxu0 0
        %960 = vmatpush1.bf16.msra.mxu0 0
        %961 = vmatprep.subr.bf16.mxu0 0
        %962 = vmatpush1.bf16.msra.mxu0 0
        %963 = vmatprep.mubr.bf16.mxu0 0
        %964 = vmatmul.mubr.bf16.gmra.mrb[0].mxu0 %v859
        %v965 = vpop.f32.mrb[0].mxu0
        %v966 = vadd.f32 %v881, %v965
        %v967 = vpop.f32.mrb[0].mxu0
        %v968 = vpop.f32.mrb[0].mxu0
        %v969 = vpop.f32.mrb[0].mxu0
        %970 = vdwg.mxu0
        %v972 = vcombine.high %v966, %v966
        %v974 = vunpack.c.l.s4 1966171168
        %v975 = vunpack.c.0.s8 %v974
        %v976 = vlaneseq
        %v977 = vshrl.u32 %v976, 7
        %v978 = vsub.s32 %v975, %v977
        %v979 = vrot.slane %v966, %v978
        %v981 = vunpack.c.l.s4 1966171168
        %v982 = vunpack.c.0.s8 %v981
        %v983 = vlaneseq
        %v984 = vshrl.u32 %v983, 7
        %v985 = vsub.s32 %v982, %v984
        %v986 = vrot.slane %v972, %v985
        %v987 = vcombine.high %v979, %v979
        %v988 = vcombine.high %v986, %v986
        %v990 = vunpack.c.l.s4 1966171168
        %v991 = vunpack.c.0.s8 %v990
        %v992 = vlaneseq
        %v993 = vshrl.u32 %v992, 7
        %v994 = vsub.s32 %v991, %v993
        %v995 = vrot.slane %v979, %v994
        %v997 = vunpack.c.l.s4 1966171168
        %v998 = vunpack.c.0.s8 %v997
        %v999 = vlaneseq
        %v1000 = vshrl.u32 %v999, 7
        %v1001 = vsub.s32 %v998, %v1000
        %v1002 = vrot.slane %v986, %v1001
        %v1004 = vunpack.c.l.s4 1966171168
        %v1005 = vunpack.c.0.s8 %v1004
        %v1006 = vlaneseq
        %v1007 = vshrl.u32 %v1006, 7
        %v1008 = vsub.s32 %v1005, %v1007
        %v1009 = vrot.slane %v987, %v1008
        %v1011 = vunpack.c.l.s4 1966171168
        %v1012 = vunpack.c.0.s8 %v1011
        %v1013 = vlaneseq
        %v1014 = vshrl.u32 %v1013, 7
        %v1015 = vsub.s32 %v1012, %v1014
        %v1016 = vrot.slane %v988, %v1015
        %v1017 = vcombine.high %v995, %v995
        %v1018 = vcombine.high %v1002, %v1002
        %v1019 = vcombine.high %v1009, %v1009
        %v1020 = vcombine.high %v1016, %v1016
        %v1021 = vlaneseq
        %v1022 = vshrl.u32 %v1021, 7
        %v1023 = vsub.s32 0, %v1022
        %v1024 = vrot.slane %v995, %v1023
        %v1025 = vlaneseq
        %v1026 = vshrl.u32 %v1025, 7
        %v1027 = vsub.s32 0, %v1026
        %v1028 = vrot.slane %v1009, %v1027
        %v1029 = vlaneseq
        %v1030 = vshrl.u32 %v1029, 7
        %v1031 = vsub.s32 0, %v1030
        %v1032 = vrot.slane %v1017, %v1031
        %v1033 = vlaneseq
        %v1034 = vshrl.u32 %v1033, 7
        %v1035 = vsub.s32 0, %v1034
        %v1036 = vrot.slane %v1019, %v1035
        %v1037 = vlaneseq
        %v1038 = vshrl.u32 %v1037, 7
        %v1039 = vsub.s32 0, %v1038
        %v1040 = vrot.slane %v1002, %v1039
        %v1041 = vlaneseq
        %v1042 = vshrl.u32 %v1041, 7
        %v1043 = vsub.s32 0, %v1042
        %v1044 = vrot.slane %v1016, %v1043
        %v1045 = vlaneseq
        %v1046 = vshrl.u32 %v1045, 7
        %v1047 = vsub.s32 0, %v1046
        %v1048 = vrot.slane %v1018, %v1047
        %v1049 = vlaneseq
        %v1050 = vshrl.u32 %v1049, 7
        %v1051 = vsub.s32 0, %v1050
        %v1052 = vrot.slane %v1020, %v1051
        %v1061 = vadd.f32 %v796, %v1024
        %v1062 = vadd.f32 %v799, %v1024
        %v1063 = vadd.f32 %v804, %v1028
        %v1064 = vadd.f32 %v807, %v1028
        %v1065 = vadd.f32 %v812, %v1032
        %v1066 = vadd.f32 %v815, %v1032
        %v1067 = vadd.f32 %v820, %v1036
        %v1068 = vadd.f32 %v823, %v1036
        %v1069 = vadd.f32 %v828, %v1040
        %v1070 = vadd.f32 %v831, %v1040
        %v1071 = vadd.f32 %v836, %v1044
        %v1072 = vadd.f32 %v839, %v1044
        %v1073 = vadd.f32 %v844, %v1048
        %v1074 = vadd.f32 %v847, %v1048
        %v1075 = vadd.f32 %v852, %v1052
        %v1076 = vadd.f32 %v855, %v1052
        %v1077 = vmax.f32 %v1061, 0.0
        %v1078 = vmax.f32 %v1062, 0.0
        %v1079 = vmax.f32 %v1063, 0.0
        %v1080 = vmax.f32 %v1064, 0.0
        %v1081 = vmax.f32 %v1065, 0.0
        %v1082 = vmax.f32 %v1066, 0.0
        %v1083 = vmax.f32 %v1067, 0.0
        %v1084 = vmax.f32 %v1068, 0.0
        %v1085 = vmax.f32 %v1069, 0.0
        %v1086 = vmax.f32 %v1070, 0.0
        %v1087 = vmax.f32 %v1071, 0.0
        %v1088 = vmax.f32 %v1072, 0.0
        %v1089 = vmax.f32 %v1073, 0.0
        %v1090 = vmax.f32 %v1074, 0.0
        %v1091 = vmax.f32 %v1075, 0.0
        %v1092 = vmax.f32 %v1076, 0.0
        %v1093 = vld [vmem:[%s8] sm:$0x1]
        %v1095 = vlaneseq
        %v1096 = vshrl.u32 %v1095, 7
        %v1097 = vsub.s32 0, %v1096
        %v1098 = vrot.slane %v1093, %v1097
        %v1100 = vmul.f32 %v1077, %v1098
        %v1101 = vmul.f32 %v1078, %v1098
        %v1102 = vmul.f32 %v1079, %v1098
        %v1103 = vmul.f32 %v1080, %v1098
        %v1104 = vmul.f32 %v1081, %v1098
        %v1105 = vmul.f32 %v1082, %v1098
        %v1106 = vmul.f32 %v1083, %v1098
        %v1107 = vmul.f32 %v1084, %v1098
        %v1108 = vmul.f32 %v1085, %v1098
        %v1109 = vmul.f32 %v1086, %v1098
        %v1110 = vmul.f32 %v1087, %v1098
        %v1111 = vmul.f32 %v1088, %v1098
        %v1112 = vmul.f32 %v1089, %v1098
        %v1113 = vmul.f32 %v1090, %v1098
        %v1114 = vmul.f32 %v1091, %v1098
        %v1115 = vmul.f32 %v1092, %v1098
        %1116 = vadd.xlane.f32.xlu0 %v1100
        %v1117 = vpop.xlane.xlu0 %1116
        %1118 = vadd.xlane.f32.xlu0 %v1101
        %v1119 = vpop.xlane.xlu0 %1118
        %1120 = vadd.xlane.f32.xlu0 %v1102
        %v1121 = vpop.xlane.xlu0 %1120
        %1122 = vadd.xlane.f32.xlu0 %v1103
        %v1123 = vpop.xlane.xlu0 %1122
        %1124 = vadd.xlane.f32.xlu0 %v1104
        %v1125 = vpop.xlane.xlu0 %1124
        %1126 = vadd.xlane.f32.xlu0 %v1105
        %v1127 = vpop.xlane.xlu0 %1126
        %1128 = vadd.xlane.f32.xlu0 %v1106
        %v1129 = vpop.xlane.xlu0 %1128
        %1130 = vadd.xlane.f32.xlu0 %v1107
        %v1131 = vpop.xlane.xlu0 %1130
        %1132 = vadd.xlane.f32.xlu0 %v1108
        %v1133 = vpop.xlane.xlu0 %1132
        %1134 = vadd.xlane.f32.xlu0 %v1109
        %v1135 = vpop.xlane.xlu0 %1134
        %1136 = vadd.xlane.f32.xlu0 %v1110
        %v1137 = vpop.xlane.xlu0 %1136
        %1138 = vadd.xlane.f32.xlu0 %v1111
        %v1139 = vpop.xlane.xlu0 %1138
        %1140 = vadd.xlane.f32.xlu0 %v1112
        %v1141 = vpop.xlane.xlu0 %1140
        %1142 = vadd.xlane.f32.xlu0 %v1113
        %v1143 = vpop.xlane.xlu0 %1142
        %1144 = vadd.xlane.f32.xlu0 %v1114
        %v1145 = vpop.xlane.xlu0 %1144
        %1146 = vadd.xlane.f32.xlu0 %v1115
        %v1147 = vpop.xlane.xlu0 %1146
        %v1164 = vlaneseq
        %v1165 = vand.u32 %v1164, 127
        %v1166 = vlaneseq
        %v1167 = vshrl.u32 %v1166, 7
        %v1168 = vsub.s32 %v1165, %v1167
        %v1169 = vrot.slane %v1117, %v1168
        %v1170 = vadd.s32 %v1165, 4294967288
        %v1171 = vlaneseq
        %v1172 = vshrl.u32 %v1171, 7
        %v1173 = vsub.s32 %v1170, %v1172
        %v1174 = vrot.slane %v1119, %v1173
        %vm1175 = vcmask 130112
        %v1176 = vsel %vm1175, %v1174, %v1169
        %v1177 = vlaneseq
        %v1178 = vshrl.u32 %v1177, 7
        %v1179 = vsub.s32 %v1165, %v1178
        %v1180 = vrot.slane %v1121, %v1179
        %v1181 = vlaneseq
        %v1182 = vshrl.u32 %v1181, 7
        %v1183 = vsub.s32 %v1170, %v1182
        %v1184 = vrot.slane %v1123, %v1183
        %v1185 = vsel %vm1175, %v1184, %v1180
        %v1186 = vlaneseq
        %v1187 = vshrl.u32 %v1186, 7
        %v1188 = vsub.s32 %v1165, %v1187
        %v1189 = vrot.slane %v1125, %v1188
        %v1190 = vlaneseq
        %v1191 = vshrl.u32 %v1190, 7
        %v1192 = vsub.s32 %v1170, %v1191
        %v1193 = vrot.slane %v1127, %v1192
        %v1194 = vsel %vm1175, %v1193, %v1189
        %v1195 = vlaneseq
        %v1196 = vshrl.u32 %v1195, 7
        %v1197 = vsub.s32 %v1165, %v1196
        %v1198 = vrot.slane %v1129, %v1197
        %v1199 = vlaneseq
        %v1200 = vshrl.u32 %v1199, 7
        %v1201 = vsub.s32 %v1170, %v1200
        %v1202 = vrot.slane %v1131, %v1201
        %v1203 = vsel %vm1175, %v1202, %v1198
        %v1204 = vlaneseq
        %v1205 = vshrl.u32 %v1204, 7
        %v1206 = vsub.s32 %v1165, %v1205
        %v1207 = vrot.slane %v1133, %v1206
        %v1208 = vlaneseq
        %v1209 = vshrl.u32 %v1208, 7
        %v1210 = vsub.s32 %v1170, %v1209
        %v1211 = vrot.slane %v1135, %v1210
        %v1212 = vsel %vm1175, %v1211, %v1207
        %v1213 = vlaneseq
        %v1214 = vshrl.u32 %v1213, 7
        %v1215 = vsub.s32 %v1165, %v1214
        %v1216 = vrot.slane %v1137, %v1215
        %v1217 = vlaneseq
        %v1218 = vshrl.u32 %v1217, 7
        %v1219 = vsub.s32 %v1170, %v1218
        %v1220 = vrot.slane %v1139, %v1219
        %v1221 = vsel %vm1175, %v1220, %v1216
        %v1222 = vlaneseq
        %v1223 = vshrl.u32 %v1222, 7
        %v1224 = vsub.s32 %v1165, %v1223
        %v1225 = vrot.slane %v1141, %v1224
        %v1226 = vlaneseq
        %v1227 = vshrl.u32 %v1226, 7
        %v1228 = vsub.s32 %v1170, %v1227
        %v1229 = vrot.slane %v1143, %v1228
        %v1230 = vsel %vm1175, %v1229, %v1225
        %v1231 = vlaneseq
        %v1232 = vshrl.u32 %v1231, 7
        %v1233 = vsub.s32 %v1165, %v1232
        %v1234 = vrot.slane %v1145, %v1233
        %v1235 = vlaneseq
        %v1236 = vshrl.u32 %v1235, 7
        %v1237 = vsub.s32 %v1170, %v1236
        %v1238 = vrot.slane %v1147, %v1237
        %v1239 = vsel %vm1175, %v1238, %v1234
        %vm1240 = vcmask 1041409
        %v1241 = vsel %vm1240, %v1185, %v1176
        %vm1242 = vcmask 1042434
        %v1243 = vsel %vm1242, %v1194, %v1241
        %vm1244 = vcmask 1043459
        %v1245 = vsel %vm1244, %v1203, %v1243
        %vm1246 = vcmask 1044484
        %v1247 = vsel %vm1246, %v1212, %v1245
        %vm1248 = vcmask 1045509
        %v1249 = vsel %vm1248, %v1221, %v1247
        %vm1250 = vcmask 1046534
        %v1251 = vsel %vm1250, %v1230, %v1249
        %vm1252 = vcmask 1047559
        %v1253 = vsel %vm1252, %v1239, %v1251
        %vm1255 = vcmask 130048
        %v1256 = vsel %vm1255, %v1253, -inf
        %1257 = vmax.xlane.f32.xlu0 %v1256
        %v1258 = vpop.xlane.xlu0 %1257
        %v1260 = vlaneseq
        %v1261 = vshrl.u32 %v1260, 7
        %v1262 = vsub.s32 0, %v1261
        %v1263 = vrot.slane %v1258, %v1262
        %v1264 = vlaneseq
        %v1265 = vshrl.u32 %v1264, 7
        %v1266 = vsub.s32 1, %v1265
        %v1267 = vrot.slane %v1258, %v1266
        %v1268 = vlaneseq
        %v1269 = vshrl.u32 %v1268, 7
        %v1270 = vsub.s32 2, %v1269
        %v1271 = vrot.slane %v1258, %v1270
        %v1272 = vlaneseq
        %v1273 = vshrl.u32 %v1272, 7
        %v1274 = vsub.s32 3, %v1273
        %v1275 = vrot.slane %v1258, %v1274
        %v1276 = vlaneseq
        %v1277 = vshrl.u32 %v1276, 7
        %v1278 = vsub.s32 4, %v1277
        %v1279 = vrot.slane %v1258, %v1278
        %v1280 = vlaneseq
        %v1281 = vshrl.u32 %v1280, 7
        %v1282 = vsub.s32 5, %v1281
        %v1283 = vrot.slane %v1258, %v1282
        %v1284 = vlaneseq
        %v1285 = vshrl.u32 %v1284, 7
        %v1286 = vsub.s32 6, %v1285
        %v1287 = vrot.slane %v1258, %v1286
        %v1288 = vlaneseq
        %v1289 = vshrl.u32 %v1288, 7
        %v1290 = vsub.s32 7, %v1289
        %v1291 = vrot.slane %v1258, %v1290
        %v1300 = vsub.f32 %v1117, %v1263
        %v1301 = vsub.f32 %v1119, %v1263
        %v1302 = vsub.f32 %v1121, %v1267
        %v1303 = vsub.f32 %v1123, %v1267
        %v1304 = vsub.f32 %v1125, %v1271
        %v1305 = vsub.f32 %v1127, %v1271
        %v1306 = vsub.f32 %v1129, %v1275
        %v1307 = vsub.f32 %v1131, %v1275
        %v1308 = vsub.f32 %v1133, %v1279
        %v1309 = vsub.f32 %v1135, %v1279
        %v1310 = vsub.f32 %v1137, %v1283
        %v1311 = vsub.f32 %v1139, %v1283
        %v1312 = vsub.f32 %v1141, %v1287
        %v1313 = vsub.f32 %v1143, %v1287
        %v1314 = vsub.f32 %v1145, %v1291
        %v1315 = vsub.f32 %v1147, %v1291
        %v1316 = vmul.f32 %v1300, 1.442695
        %v1317 = vpow.pop %v1316
        %v1318 = vmul.f32 %v1301, 1.442695
        %v1319 = vpow.pop %v1318
        %v1320 = vmul.f32 %v1302, 1.442695
        %v1321 = vpow.pop %v1320
        %v1322 = vmul.f32 %v1303, 1.442695
        %v1323 = vpow.pop %v1322
        %v1324 = vmul.f32 %v1304, 1.442695
        %v1325 = vpow.pop %v1324
        %v1326 = vmul.f32 %v1305, 1.442695
        %v1327 = vpow.pop %v1326
        %v1328 = vmul.f32 %v1306, 1.442695
        %v1329 = vpow.pop %v1328
        %v1330 = vmul.f32 %v1307, 1.442695
        %v1331 = vpow.pop %v1330
        %v1332 = vmul.f32 %v1308, 1.442695
        %v1333 = vpow.pop %v1332
        %v1334 = vmul.f32 %v1309, 1.442695
        %v1335 = vpow.pop %v1334
        %v1336 = vmul.f32 %v1310, 1.442695
        %v1337 = vpow.pop %v1336
        %v1338 = vmul.f32 %v1311, 1.442695
        %v1339 = vpow.pop %v1338
        %v1340 = vmul.f32 %v1312, 1.442695
        %v1341 = vpow.pop %v1340
        %v1342 = vmul.f32 %v1313, 1.442695
        %v1343 = vpow.pop %v1342
        %v1344 = vmul.f32 %v1314, 1.442695
        %v1345 = vpow.pop %v1344
        %v1346 = vmul.f32 %v1315, 1.442695
        %v1347 = vpow.pop %v1346
        %1364 = vset.pattern.permute.xlu0 0
        %1365 = vperm.xlu0 %1364, %v1317
        %v1366 = vpop.permute.xlu0 %1365
        %1367 = vset.pattern.permute.xlu0 0
        %1368 = vperm.xlu0 %1367, %v1319
        %v1369 = vpop.permute.xlu0 %1368
        %1370 = vset.pattern.permute.xlu0 0
        %1371 = vperm.xlu0 %1370, %v1321
        %v1372 = vpop.permute.xlu0 %1371
        %1373 = vset.pattern.permute.xlu0 0
        %1374 = vperm.xlu0 %1373, %v1323
        %v1375 = vpop.permute.xlu0 %1374
        %1376 = vset.pattern.permute.xlu0 0
        %1377 = vperm.xlu0 %1376, %v1325
        %v1378 = vpop.permute.xlu0 %1377
        %1379 = vset.pattern.permute.xlu0 0
        %1380 = vperm.xlu0 %1379, %v1327
        %v1381 = vpop.permute.xlu0 %1380
        %1382 = vset.pattern.permute.xlu0 0
        %1383 = vperm.xlu0 %1382, %v1329
        %v1384 = vpop.permute.xlu0 %1383
        %1385 = vset.pattern.permute.xlu0 0
        %1386 = vperm.xlu0 %1385, %v1331
        %v1387 = vpop.permute.xlu0 %1386
        %1388 = vset.pattern.permute.xlu0 0
        %1389 = vperm.xlu0 %1388, %v1333
        %v1390 = vpop.permute.xlu0 %1389
        %1391 = vset.pattern.permute.xlu0 0
        %1392 = vperm.xlu0 %1391, %v1335
        %v1393 = vpop.permute.xlu0 %1392
        %1394 = vset.pattern.permute.xlu0 0
        %1395 = vperm.xlu0 %1394, %v1337
        %v1396 = vpop.permute.xlu0 %1395
        %1397 = vset.pattern.permute.xlu0 0
        %1398 = vperm.xlu0 %1397, %v1339
        %v1399 = vpop.permute.xlu0 %1398
        %1400 = vset.pattern.permute.xlu0 0
        %1401 = vperm.xlu0 %1400, %v1341
        %v1402 = vpop.permute.xlu0 %1401
        %1403 = vset.pattern.permute.xlu0 0
        %1404 = vperm.xlu0 %1403, %v1343
        %v1405 = vpop.permute.xlu0 %1404
        %1406 = vset.pattern.permute.xlu0 0
        %1407 = vperm.xlu0 %1406, %v1345
        %v1408 = vpop.permute.xlu0 %1407
        %1409 = vset.pattern.permute.xlu0 0
        %1410 = vperm.xlu0 %1409, %v1347
        %v1411 = vpop.permute.xlu0 %1410
        %v1412 = vlaneseq
        %v1413 = vshrl.u32 %v1412, 7
        %v1414 = vsub.s32 %v1165, %v1413
        %v1415 = vrot.slane %v1366, %v1414
        %v1416 = vlaneseq
        %v1417 = vshrl.u32 %v1416, 7
        %v1418 = vsub.s32 %v1170, %v1417
        %v1419 = vrot.slane %v1369, %v1418
        %v1420 = vsel %vm1175, %v1419, %v1415
        %v1421 = vlaneseq
        %v1422 = vshrl.u32 %v1421, 7
        %v1423 = vsub.s32 %v1165, %v1422
        %v1424 = vrot.slane %v1372, %v1423
        %v1425 = vlaneseq
        %v1426 = vshrl.u32 %v1425, 7
        %v1427 = vsub.s32 %v1170, %v1426
        %v1428 = vrot.slane %v1375, %v1427
        %v1429 = vsel %vm1175, %v1428, %v1424
        %v1430 = vlaneseq
        %v1431 = vshrl.u32 %v1430, 7
        %v1432 = vsub.s32 %v1165, %v1431
        %v1433 = vrot.slane %v1378, %v1432
        %v1434 = vlaneseq
        %v1435 = vshrl.u32 %v1434, 7
        %v1436 = vsub.s32 %v1170, %v1435
        %v1437 = vrot.slane %v1381, %v1436
        %v1438 = vsel %vm1175, %v1437, %v1433
        %v1439 = vlaneseq
        %v1440 = vshrl.u32 %v1439, 7
        %v1441 = vsub.s32 %v1165, %v1440
        %v1442 = vrot.slane %v1384, %v1441
        %v1443 = vlaneseq
        %v1444 = vshrl.u32 %v1443, 7
        %v1445 = vsub.s32 %v1170, %v1444
        %v1446 = vrot.slane %v1387, %v1445
        %v1447 = vsel %vm1175, %v1446, %v1442
        %v1448 = vlaneseq
        %v1449 = vshrl.u32 %v1448, 7
        %v1450 = vsub.s32 %v1165, %v1449
        %v1451 = vrot.slane %v1390, %v1450
        %v1452 = vlaneseq
        %v1453 = vshrl.u32 %v1452, 7
        %v1454 = vsub.s32 %v1170, %v1453
        %v1455 = vrot.slane %v1393, %v1454
        %v1456 = vsel %vm1175, %v1455, %v1451
        %v1457 = vlaneseq
        %v1458 = vshrl.u32 %v1457, 7
        %v1459 = vsub.s32 %v1165, %v1458
        %v1460 = vrot.slane %v1396, %v1459
        %v1461 = vlaneseq
        %v1462 = vshrl.u32 %v1461, 7
        %v1463 = vsub.s32 %v1170, %v1462
        %v1464 = vrot.slane %v1399, %v1463
        %v1465 = vsel %vm1175, %v1464, %v1460
        %v1466 = vlaneseq
        %v1467 = vshrl.u32 %v1466, 7
        %v1468 = vsub.s32 %v1165, %v1467
        %v1469 = vrot.slane %v1402, %v1468
        %v1470 = vlaneseq
        %v1471 = vshrl.u32 %v1470, 7
        %v1472 = vsub.s32 %v1170, %v1471
        %v1473 = vrot.slane %v1405, %v1472
        %v1474 = vsel %vm1175, %v1473, %v1469
        %v1475 = vlaneseq
        %v1476 = vshrl.u32 %v1475, 7
        %v1477 = vsub.s32 %v1165, %v1476
        %v1478 = vrot.slane %v1408, %v1477
        %v1479 = vlaneseq
        %v1480 = vshrl.u32 %v1479, 7
        %v1481 = vsub.s32 %v1170, %v1480
        %v1482 = vrot.slane %v1411, %v1481
        %v1483 = vsel %vm1175, %v1482, %v1478
        %v1484 = vsel %vm1240, %v1429, %v1420
        %v1485 = vsel %vm1242, %v1438, %v1484
        %v1486 = vsel %vm1244, %v1447, %v1485
        %v1487 = vsel %vm1246, %v1456, %v1486
        %v1488 = vsel %vm1248, %v1465, %v1487
        %v1489 = vsel %vm1250, %v1474, %v1488
        %v1490 = vsel %vm1252, %v1483, %v1489
        %v1492 = vsel %vm1255, %v1490, 0.0
        %1493 = vadd.xlane.f32.xlu0 %v1492
        %v1494 = vpop.xlane.xlu0 %1493
        %v1495 = vrcp.pop %v1494
        %v1497 = vlaneseq
        %v1498 = vshrl.u32 %v1497, 7
        %v1499 = vsub.s32 0, %v1498
        %v1500 = vrot.slane %v1495, %v1499
        %v1501 = vlaneseq
        %v1502 = vshrl.u32 %v1501, 7
        %v1503 = vsub.s32 1, %v1502
        %v1504 = vrot.slane %v1495, %v1503
        %v1505 = vlaneseq
        %v1506 = vshrl.u32 %v1505, 7
        %v1507 = vsub.s32 2, %v1506
        %v1508 = vrot.slane %v1495, %v1507
        %v1509 = vlaneseq
        %v1510 = vshrl.u32 %v1509, 7
        %v1511 = vsub.s32 3, %v1510
        %v1512 = vrot.slane %v1495, %v1511
        %v1513 = vlaneseq
        %v1514 = vshrl.u32 %v1513, 7
        %v1515 = vsub.s32 4, %v1514
        %v1516 = vrot.slane %v1495, %v1515
        %v1517 = vlaneseq
        %v1518 = vshrl.u32 %v1517, 7
        %v1519 = vsub.s32 5, %v1518
        %v1520 = vrot.slane %v1495, %v1519
        %v1521 = vlaneseq
        %v1522 = vshrl.u32 %v1521, 7
        %v1523 = vsub.s32 6, %v1522
        %v1524 = vrot.slane %v1495, %v1523
        %v1525 = vlaneseq
        %v1526 = vshrl.u32 %v1525, 7
        %v1527 = vsub.s32 7, %v1526
        %v1528 = vrot.slane %v1495, %v1527
        %v1537 = vmul.f32 %v1317, %v1500
        %v1538 = vmul.f32 %v1319, %v1500
        %v1539 = vmul.f32 %v1321, %v1504
        %v1540 = vmul.f32 %v1323, %v1504
        %v1541 = vmul.f32 %v1325, %v1508
        %v1542 = vmul.f32 %v1327, %v1508
        %v1543 = vmul.f32 %v1329, %v1512
        %v1544 = vmul.f32 %v1331, %v1512
        %v1545 = vmul.f32 %v1333, %v1516
        %v1546 = vmul.f32 %v1335, %v1516
        %v1547 = vmul.f32 %v1337, %v1520
        %v1548 = vmul.f32 %v1339, %v1520
        %v1549 = vmul.f32 %v1341, %v1524
        %v1550 = vmul.f32 %v1343, %v1524
        %v1551 = vmul.f32 %v1345, %v1528
        %v1552 = vmul.f32 %v1347, %v1528
        %v1553 = vunpack.c.l.bf16 %v434
        %v1554 = vunpack.c.l.bf16 %v435
        %v1555 = vunpack.c.l.bf16 %v436
        %v1556 = vunpack.c.l.bf16 %v437
        %v1557 = vunpack.c.l.bf16 %v438
        %v1558 = vunpack.c.l.bf16 %v439
        %v1559 = vunpack.c.l.bf16 %v440
        %v1560 = vunpack.c.l.bf16 %v441
        %v1561 = vunpack.c.l.bf16 %v442
        %v1562 = vunpack.c.l.bf16 %v443
        %v1563 = vunpack.c.l.bf16 %v444
        %v1564 = vunpack.c.l.bf16 %v445
        %v1565 = vunpack.c.l.bf16 %v446
        %v1566 = vunpack.c.l.bf16 %v447
        %v1567 = vunpack.c.l.bf16 %v448
        %v1568 = vunpack.c.l.bf16 %v449
        %1570 = vset.pattern.permute.xlu0 0
        %1571 = vperm.xlu0 %1570, %v1537
        %v1572 = vpop.permute.xlu0 %1571
        %1575 = vset.pattern.permute.xlu0 0
        %1576 = vperm.xlu0 %1575, %v1538
        %v1577 = vpop.permute.xlu0 %1576
        %1580 = vset.pattern.permute.xlu0 0
        %1581 = vperm.xlu0 %1580, %v1539
        %v1582 = vpop.permute.xlu0 %1581
        %1585 = vset.pattern.permute.xlu0 0
        %1586 = vperm.xlu0 %1585, %v1540
        %v1587 = vpop.permute.xlu0 %1586
        %1590 = vset.pattern.permute.xlu0 0
        %1591 = vperm.xlu0 %1590, %v1541
        %v1592 = vpop.permute.xlu0 %1591
        %1595 = vset.pattern.permute.xlu0 0
        %1596 = vperm.xlu0 %1595, %v1542
        %v1597 = vpop.permute.xlu0 %1596
        %1600 = vset.pattern.permute.xlu0 0
        %1601 = vperm.xlu0 %1600, %v1543
        %v1602 = vpop.permute.xlu0 %1601
        %1605 = vset.pattern.permute.xlu0 0
        %1606 = vperm.xlu0 %1605, %v1544
        %v1607 = vpop.permute.xlu0 %1606
        %1610 = vset.pattern.permute.xlu0 0
        %1611 = vperm.xlu0 %1610, %v1545
        %v1612 = vpop.permute.xlu0 %1611
        %1615 = vset.pattern.permute.xlu0 0
        %1616 = vperm.xlu0 %1615, %v1546
        %v1617 = vpop.permute.xlu0 %1616
        %1620 = vset.pattern.permute.xlu0 0
        %1621 = vperm.xlu0 %1620, %v1547
        %v1622 = vpop.permute.xlu0 %1621
        %1625 = vset.pattern.permute.xlu0 0
        %1626 = vperm.xlu0 %1625, %v1548
        %v1627 = vpop.permute.xlu0 %1626
        %1630 = vset.pattern.permute.xlu0 0
        %1631 = vperm.xlu0 %1630, %v1549
        %v1632 = vpop.permute.xlu0 %1631
        %1635 = vset.pattern.permute.xlu0 0
        %1636 = vperm.xlu0 %1635, %v1550
        %v1637 = vpop.permute.xlu0 %1636
        %1640 = vset.pattern.permute.xlu0 0
        %1641 = vperm.xlu0 %1640, %v1551
        %v1642 = vpop.permute.xlu0 %1641
        %1645 = vset.pattern.permute.xlu0 0
        %1646 = vperm.xlu0 %1645, %v1552
        %v1647 = vpop.permute.xlu0 %1646
        %v1649 = vmul.f32 %v1572, %v1553
        %v1650 = vmul.f32 %v1577, %v1554
        %v1651 = vmul.f32 %v1582, %v1555
        %v1652 = vmul.f32 %v1587, %v1556
        %v1653 = vmul.f32 %v1592, %v1557
        %v1654 = vmul.f32 %v1597, %v1558
        %v1655 = vmul.f32 %v1602, %v1559
        %v1656 = vmul.f32 %v1607, %v1560
        %v1657 = vmul.f32 %v1612, %v1561
        %v1658 = vmul.f32 %v1617, %v1562
        %v1659 = vmul.f32 %v1622, %v1563
        %v1660 = vmul.f32 %v1627, %v1564
        %v1661 = vmul.f32 %v1632, %v1565
        %v1662 = vmul.f32 %v1637, %v1566
        %v1663 = vmul.f32 %v1642, %v1567
        %v1664 = vmul.f32 %v1647, %v1568
        %v1665 = vadd.f32 %v1649, %v1650
        %v1666 = vrot.slane %v1665, 4
        %v1667 = vadd.f32 %v1665, %v1666
        %v1668 = vrot.slane %v1667, 2
        %v1669 = vadd.f32 %v1667, %v1668
        %v1670 = vrot.slane %v1669, 1
        %v1671 = vadd.f32 %v1669, %v1670
        %v1672 = vadd.f32 %v1651, %v1652
        %v1673 = vrot.slane %v1672, 4
        %v1674 = vadd.f32 %v1672, %v1673
        %v1675 = vrot.slane %v1674, 2
        %v1676 = vadd.f32 %v1674, %v1675
        %v1677 = vrot.slane %v1676, 1
        %v1678 = vadd.f32 %v1676, %v1677
        %v1679 = vadd.f32 %v1653, %v1654
        %v1680 = vrot.slane %v1679, 4
        %v1681 = vadd.f32 %v1679, %v1680
        %v1682 = vrot.slane %v1681, 2
        %v1683 = vadd.f32 %v1681, %v1682
        %v1684 = vrot.slane %v1683, 1
        %v1685 = vadd.f32 %v1683, %v1684
        %v1686 = vadd.f32 %v1655, %v1656
        %v1687 = vrot.slane %v1686, 4
        %v1688 = vadd.f32 %v1686, %v1687
        %v1689 = vrot.slane %v1688, 2
        %v1690 = vadd.f32 %v1688, %v1689
        %v1691 = vrot.slane %v1690, 1
        %v1692 = vadd.f32 %v1690, %v1691
        %v1693 = vadd.f32 %v1657, %v1658
        %v1694 = vrot.slane %v1693, 4
        %v1695 = vadd.f32 %v1693, %v1694
        %v1696 = vrot.slane %v1695, 2
        %v1697 = vadd.f32 %v1695, %v1696
        %v1698 = vrot.slane %v1697, 1
        %v1699 = vadd.f32 %v1697, %v1698
        %v1700 = vadd.f32 %v1659, %v1660
        %v1701 = vrot.slane %v1700, 4
        %v1702 = vadd.f32 %v1700, %v1701
        %v1703 = vrot.slane %v1702, 2
        %v1704 = vadd.f32 %v1702, %v1703
        %v1705 = vrot.slane %v1704, 1
        %v1706 = vadd.f32 %v1704, %v1705
        %v1707 = vadd.f32 %v1661, %v1662
        %v1708 = vrot.slane %v1707, 4
        %v1709 = vadd.f32 %v1707, %v1708
        %v1710 = vrot.slane %v1709, 2
        %v1711 = vadd.f32 %v1709, %v1710
        %v1712 = vrot.slane %v1711, 1
        %v1713 = vadd.f32 %v1711, %v1712
        %v1714 = vadd.f32 %v1663, %v1664
        %v1715 = vrot.slane %v1714, 4
        %v1716 = vadd.f32 %v1714, %v1715
        %v1717 = vrot.slane %v1716, 2
        %v1718 = vadd.f32 %v1716, %v1717
        %v1719 = vrot.slane %v1718, 1
        %v1720 = vadd.f32 %v1718, %v1719
        %v1729 = vsel %vm1240, %v1678, %v1671
        %v1730 = vsel %vm1242, %v1685, %v1729
        %v1731 = vsel %vm1244, %v1692, %v1730
        %v1732 = vsel %vm1246, %v1699, %v1731
        %v1733 = vsel %vm1248, %v1706, %v1732
        %v1734 = vsel %vm1250, %v1713, %v1733
        %v1735 = vsel %vm1252, %v1720, %v1734
        %1737 = vst [vmem:[%s431] sm:$0xff] %v1735
        %s1738 = sand.u32 %s237, 1
        %s1739 = scalar_lea.sflag [#allocation4], %s1738
        %s1740 = sand.u32 %s237, 1
        %s1741 = smul.addr %s1740, 8
        %s1742 = scalar_lea.vmem [#allocation11], %s1741
        // Predicated region
        $region77: #{tpu_custom_call.1} parent=55 // pred_check
          %p1743 = pneg %p247
        $region78: #{tpu_custom_call.1} parent=55 // pred_check_branch
          %1745 = sbr.rel (%p1743) target = $region80
        $region79: #{tpu_custom_call.1} parent=55 // pred_region
          %s1747 = ssub.s32 128, 128
          %1748 = vsyncadd %s1739, %s1747
          %s1749 = smul.addr %s30, 128
          %s1750 = scalar_lea.hbm %s9, %s1749
          %s1752 = sshll.u32 %s1742, 4
          %s1753 = int_to_ptr.vmem [resolvable:$true] %s1752
          %1755 = dma.vmem_to_hbm [thread:$0]  %s1753, 128, %s1750, %s1739
        $region80: #{tpu_custom_call.1} parent=55 // pred_fallthru
          _
      $region56: #{tpu_custom_call.1} parent=5 // pred_fallthru
        _
      %p1756 = scmp.le.s32.totalorder 2, %s25
      // Predicated region
      $region81: #{tpu_custom_call.1} parent=5 // pred_check
        %p1757 = pneg %p1756
      $region82: #{tpu_custom_call.1} parent=5 // pred_check_branch
        %1759 = sbr.rel (%p1757) target = $region84
      $region83: #{tpu_custom_call.1} parent=5 // pred_region
        %s1760 = ssub.s32 %s25, 2
        // Predicated region
        $region85: #{tpu_custom_call.1} parent=83 // pred_check
          %p1761 = pneg %p253
        $region86: #{tpu_custom_call.1} parent=83 // pred_check_branch
          %1763 = sbr.rel (%p1761) target = $region88
        $region87: #{tpu_custom_call.1} parent=83 // pred_region
          %s1764 = sand.u32 %s238, 1
          %s1765 = scalar_lea.sflag [#allocation4], %s1764
          %s1766 = sand.u32 %s238, 1
          %s1767 = smul.addr %s1766, 8
          %s1768 = scalar_lea.vmem [#allocation11], %s1767
          %1769 = dma.done %s1765, 128
        $region88: #{tpu_custom_call.1} parent=83 // pred_fallthru
          _
      $region84: #{tpu_custom_call.1} parent=5 // pred_fallthru
        _
    $region6: #{tpu_custom_call.1} parent=1 // loop_footer
      %s29 = sadd.s32 1, %s25
    $region7: #{tpu_custom_call.1} parent=1 // loop_footer_branch
      %24 = sbr.rel target = $region3
    $region8: #{tpu_custom_call.1} parent=1 // loop_exit
      _
    %1770 = vsyncpa [#allocation3], 1
    %s1771 = scalar_lea.sflag [#allocation3], 1
    %1772 = vsyncpa %s1771, 1
    %1773 = vsyncpa [#allocation6], 1
    %s1774 = scalar_lea.sflag [#allocation6], 1
    %1775 = vsyncpa %s1774, 1
    %1776 = vsyncpa [#allocation9], 1
    %1777 = vsyncpa [#allocation4], 1
    %s1778 = scalar_lea.sflag [#allocation4], 1
    %1779 = vsyncpa %s1778, 1

</llo_original>
